<compile_context>
chip_gen: v6e
topology: v6e:2x2x1
jax: 0.10.0
libtpu: 0.0.40
codegen_flags: <defaults>
</compile_context>

<pallas_src>
import functools

import jax
import jax.numpy as jnp
from jax.experimental import pallas as pl
from jax.experimental.pallas import tpu as pltpu

_LANES = 128                 # points per lane-dense row
_PTS_LANES = 3 * _LANES      # 384 interleaved floats (x,y,z) per row
_SUBLANES = 8
_MAX_TILE_ROWS = 2048        # 256K points per grid step


def _round_up(x, m):
    return ((x + m - 1) // m) * m


# ----------------------------- kernels ------------------------------------ #
# Kernel signature (all variants):
#   param_ref : SMEM (k,)        f32   radius / half side-lengths / radii
#   ctile_ref : VMEM (1, 384)    f32   [cx, cy, cz] tiled across the lanes
#   sel_ref   : VMEM (384, 384)  bf16  0/1 de-interleave (selection) matrix
#   pts_ref   : VMEM (T, 384)    f32   interleaved x,y,z,... (128 points/row)
#   out_ref   : VMEM (T, 128)    f32   signed distance per point


def _deinterleave(ctile_ref, sel_ref, pts_ref):
    """Centered (T,128) x/y/z slabs from the interleaved (T,384) block.

    The AoS->SoA transpose runs on the idle MXU: exact bf16 hi/lo split of the
    centered coords x an exact 0/1 selection matrix, accumulated in f32
    (2 bf16 passes -> ~4e-6 relative error on the coordinates).
    """
    d = pts_ref[...] - ctile_ref[...]                    # centered coords, f32
    hi = d.astype(jnp.bfloat16)
    lo = (d - hi.astype(jnp.float32)).astype(jnp.bfloat16)
    s = sel_ref[...]
    dxyz = (jnp.dot(hi, s, preferred_element_type=jnp.float32)
            + jnp.dot(lo, s, preferred_element_type=jnp.float32))
    dx = dxyz[:, 0:_LANES]
    dy = dxyz[:, _LANES:2 * _LANES]
    dz = dxyz[:, 2 * _LANES:3 * _LANES]
    return dx, dy, dz


def _sphere_sdf_kernel(radius_ref, ctile_ref, sel_ref, pts_ref, out_ref):
    dx, dy, dz = _deinterleave(ctile_ref, sel_ref, pts_ref)
    out_ref[...] = jnp.sqrt(dx * dx + dy * dy + dz * dz) - radius_ref[0]


def _box_sdf_kernel(half_ref, ctile_ref, sel_ref, pts_ref, out_ref):
    dx, dy, dz = _deinterleave(ctile_ref, sel_ref, pts_ref)
    d0 = jnp.abs(dx) - half_ref[0]
    d1 = jnp.abs(dy) - half_ref[1]
    d2 = jnp.abs(dz) - half_ref[2]
    p0 = jnp.maximum(d0, 0.0)
    p1 = jnp.maximum(d1, 0.0)
    p2 = jnp.maximum(d2, 0.0)
    outside = jnp.sqrt(p0 * p0 + p1 * p1 + p2 * p2)
    inside = jnp.minimum(jnp.maximum(jnp.maximum(d0, d1), d2), 0.0)
    out_ref[...] = outside + inside


def _torus_sdf_kernel(radii_ref, ctile_ref, sel_ref, pts_ref, out_ref):
    dx, dy, dz = _deinterleave(ctile_ref, sel_ref, pts_ref)
    q = jnp.sqrt(dx * dx + dy * dy) - radii_ref[0]
    out_ref[...] = jnp.sqrt(q * q + dz * dz) - radii_ref[1]


_KERNELS = {
    "sphere": _sphere_sdf_kernel,
    "box": _box_sdf_kernel,
    "torus": _torus_sdf_kernel,
}


# ----------------------------- wrapper ------------------------------------ #

def _selection_matrix():
    """(384, 384) 0/1 matrix: interleaved lanes -> [x | y | z] lane blocks."""
    j = jnp.arange(_PTS_LANES)
    src = 3 * (j % _LANES) + (j // _LANES)      # interleaved lane feeding output lane j
    k = jnp.arange(_PTS_LANES)
    return (k[:, None] == src[None, :]).astype(jnp.bfloat16)


@functools.partial(jax.jit, static_argnames=("sdf_type", "max_tile_rows"))
def sdf_surface_forward(points, center, param, *, sdf_type="sphere",
                        max_tile_rows=_MAX_TILE_ROWS):
    """Pallas equivalent of SDFSurface.forward (== get_distance).

    points : any shape that flattens to (-1, 3), float32
    center : (3,) float32
    param  : sphere -> (1,) radius ; box -> (3,) side_lengths ; torus -> (2,) radii
    returns (N, 1) float32 signed distances.

    Fast path: N % 128 == 0 (interleaved buffer is viewed lane-densely with a
    free reshape and the output trim is a no-op).  Ragged / tiny N pays one
    small flat-pad copy and a 4 B/pt output slice.
    """
    pts_flat = points.reshape(-1).astype(jnp.float32)   # x0,y0,z0,x1,y1,z1,...
    n = pts_flat.shape[0] // 3

    # Lane-dense 2-D view of the interleaved buffer: (rows, 384).
    rows = max(pl.cdiv(n, _LANES), _SUBLANES)
    flat_len = rows * _PTS_LANES
    if pts_flat.shape[0] != flat_len:
        # Ragged / tiny N slow path: one small pad copy.
        pts_flat = jnp.pad(pts_flat, (0, flat_len - pts_flat.shape[0]))
    pts2d = pts_flat.reshape(rows, _PTS_LANES)           # free bitcast-reshape

    # Balanced tiles (no padding cliff); partial last block is masked by
    # Pallas boundary handling.  >= 4 steps when there is enough work so each
    # v7x TensorCore pipelines >= 2 steps.
    grid = pl.cdiv(rows, max_tile_rows)
    if rows >= 4 * _SUBLANES:
        grid = max(grid, 4)
    tile_rows = _round_up(pl.cdiv(rows, grid), _SUBLANES)
    grid = pl.cdiv(rows, tile_rows)

    center = jnp.asarray(center, jnp.float32).reshape(3)
    param = jnp.asarray(param, jnp.float32).reshape(-1)
    if sdf_type == "box":
        param = param * 0.5                               # half side-lengths
    ctile = jnp.tile(center, _LANES).reshape(1, _PTS_LANES)
    sel = _selection_matrix()                             # constant-folded by XLA

    out = pl.pallas_call(
        _KERNELS[sdf_type],
        out_shape=jax.ShapeDtypeStruct((rows, _LANES), jnp.float32),
        grid=(grid,),
        in_specs=[
            pl.BlockSpec(memory_space=pltpu.MemorySpace.SMEM),             # params
            pl.BlockSpec((1, _PTS_LANES), lambda i: (0, 0)),               # center row
            pl.BlockSpec((_PTS_LANES, _PTS_LANES), lambda i: (0, 0)),      # selection
            pl.BlockSpec((tile_rows, _PTS_LANES), lambda i: (i, 0)),       # points (AoS)
        ],
        out_specs=pl.BlockSpec((tile_rows, _LANES), lambda i: (i, 0)),
        compiler_params=pltpu.CompilerParams(
            dimension_semantics=("parallel",),
            vmem_limit_bytes=40 * 1024 * 1024,
        ),
    )(param, ctile, sel, pts2d)

    # out[r, l] is the SDF of flattened point index r*128 + l.  The slice is a
    # no-op when n % 128 == 0; otherwise it only touches the 4 B/pt output.
    return out.reshape(-1)[:n].reshape(-1, 1)


# ----------------------- pure-JAX references ------------------------------- #

def _sphere_ref(points, center, radius):
    pts = points.reshape(-1, 3)
    return jnp.linalg.norm(pts - center[None, :], axis=-1, keepdims=True) - radius


def _box_ref(points, center, side):
    pts = points.reshape(-1, 3)
    d = jnp.abs(pts - center[None, :]) - side[None, :] / 2.0
    out = (jnp.linalg.norm(jnp.maximum(d, 0.0), axis=-1)
           + jnp.minimum(jnp.max(d, axis=-1), 0.0))
    return out[:, None]


def _torus_ref(points, center, radii):
    pts = points.reshape(-1, 3)
    d = pts - center[None, :]
    q0 = jnp.linalg.norm(d[:, :2], axis=-1) - radii[0]
    return (jnp.sqrt(q0 * q0 + d[:, 2] ** 2) - radii[1])[:, None]


# ----------------------------- main ---------------------------------------- #

if __name__ == "__main__":
    key = jax.random.PRNGKey(0)
    key_main, key_ragged = jax.random.split(key)

    # Deterministic "cfg" parameters (SDFSurface with sdf.type == 'sphere').
    center = jnp.array([0.0, 0.0, -2.0], jnp.float32)    # cfg.sdf.center.val
    radius = jnp.array([1.0], jnp.float32)                # cfg.sdf.radius.val
    sides = jnp.array([1.0, 1.5, 2.0], jnp.float32)       # box side_lengths
    radii = jnp.array([1.0, 0.25], jnp.float32)           # torus radii
    # TODO(synk): cfg.feature / get_color are not part of forward(); omitted.

    # Small batch of 3D points: (2, 512, 3) -> flattened to (1024, 3) inside
    # (N % 128 == 0 -> zero-copy fast path).
    points = jax.random.normal(key_main, (2, 512, 3), dtype=jnp.float32)

    out = jax.block_until_ready(
        sdf_surface_forward(points, center, radius, sdf_type="sphere"))
    assert out.shape == (1024, 1), out.shape
    ref = _sphere_ref(points, center, radius[0])
    assert jnp.allclose(out, ref, atol=1e-4), float(jnp.max(jnp.abs(out - ref)))

    out_b = jax.block_until_ready(
        sdf_surface_forward(points, center, sides, sdf_type="box"))
    ref_b = _box_ref(points, center, sides)
    assert jnp.allclose(out_b, ref_b, atol=1e-4), float(jnp.max(jnp.abs(out_b - ref_b)))

    out_t = jax.block_until_ready(
        sdf_surface_forward(points, center, radii, sdf_type="torus"))
    ref_t = _torus_ref(points, center, radii)
    assert jnp.allclose(out_t, ref_t, atol=1e-4), float(jnp.max(jnp.abs(out_t - ref_t)))

    # Ragged N (exercises the documented slow path: flat pad + output trim).
    pts_ragged = jax.random.normal(key_ragged, (1000, 3), dtype=jnp.float32)
    out_r = jax.block_until_ready(
        sdf_surface_forward(pts_ragged, center, radius, sdf_type="sphere"))
    assert out_r.shape == (1000, 1), out_r.shape
    ref_r = _sphere_ref(pts_ragged, center, radius[0])
    assert jnp.allclose(out_r, ref_r, atol=1e-4), float(jnp.max(jnp.abs(out_r - ref_r)))

    print("KERNEL_OK")
</pallas_src>

<mosaic_0001>
module attributes {stable_mosaic.version = 11 : i64} {
  func.func @_sphere_sdf_kernel(%arg0: i32, %arg1: memref<1xf32, #tpu.memory_space<smem>>, %arg2: memref<1x384xf32, #tpu.memory_space<vmem>>, %arg3: memref<384x384xbf16, #tpu.memory_space<vmem>>, %arg4: memref<8x384xf32, #tpu.memory_space<vmem>>, %arg5: memref<8x128xf32, #tpu.memory_space<vmem>>) attributes {dimension_semantics = [#tpu.dimension_semantics<parallel>], iteration_bounds = array<i64: 1>, scalar_prefetch = 0 : i64, scratch_operands = 0 : i64, tpu.core_type = #tpu.core_type<tc>, window_params = [{transform_indices = @transform_0, window_bounds = array<i64: 1>}, {pipeline_mode = #tpu.pipeline_mode<synchronous>, transform_indices = @transform_1, window_bounds = array<i64: 1, 384>}, {pipeline_mode = #tpu.pipeline_mode<synchronous>, transform_indices = @transform_2, window_bounds = array<i64: 384, 384>}, {transform_indices = @transform_3, window_bounds = array<i64: 8, 384>}, {transform_indices = @transform_4, window_bounds = array<i64: 8, 128>}]} {
    %c0 = arith.constant 0 : index
    %c0_0 = arith.constant 0 : index
    %0 = vector.load %arg4[%c0, %c0_0] : memref<8x384xf32, #tpu.memory_space<vmem>>, vector<8x384xf32>
    %c0_1 = arith.constant 0 : index
    %c0_2 = arith.constant 0 : index
    %1 = vector.load %arg2[%c0_1, %c0_2] : memref<1x384xf32, #tpu.memory_space<vmem>>, vector<1x384xf32>
    %2 = vector.broadcast %1 : vector<1x384xf32> to vector<8x384xf32>
    %3 = arith.subf %0, %2 : vector<8x384xf32>
    %4 = arith.truncf %3 : vector<8x384xf32> to vector<8x384xbf16>
    %5 = arith.extf %4 : vector<8x384xbf16> to vector<8x384xf32>
    %6 = arith.subf %3, %5 : vector<8x384xf32>
    %7 = arith.truncf %6 : vector<8x384xf32> to vector<8x384xbf16>
    %c0_3 = arith.constant 0 : index
    %c0_4 = arith.constant 0 : index
    %8 = vector.load %arg3[%c0_3, %c0_4] : memref<384x384xbf16, #tpu.memory_space<vmem>>, vector<384x384xbf16>
    %cst = arith.constant dense<0.000000e+00> : vector<8x384xf32>
    %9 = tpu.matmul %4, %8, %cst {dimension_numbers = #tpu.dot_dimension_numbers<[1], [0], [0], [1], [0, 0, 1, 1], [], []>} : vector<8x384xbf16>, vector<384x384xbf16>, vector<8x384xf32> -> vector<8x384xf32>
    %cst_5 = arith.constant dense<0.000000e+00> : vector<8x384xf32>
    %10 = tpu.matmul %7, %8, %cst_5 {dimension_numbers = #tpu.dot_dimension_numbers<[1], [0], [0], [1], [0, 0, 1, 1], [], []>} : vector<8x384xbf16>, vector<384x384xbf16>, vector<8x384xf32> -> vector<8x384xf32>
    %11 = arith.addf %9, %10 : vector<8x384xf32>
    %12 = vector.extract_strided_slice %11 {offsets = [0, 0], sizes = [8, 128], strides = [1, 1]} : vector<8x384xf32> to vector<8x128xf32>
    %13 = vector.extract_strided_slice %11 {offsets = [0, 128], sizes = [8, 128], strides = [1, 1]} : vector<8x384xf32> to vector<8x128xf32>
    %14 = vector.extract_strided_slice %11 {offsets = [0, 256], sizes = [8, 128], strides = [1, 1]} : vector<8x384xf32> to vector<8x128xf32>
    %15 = arith.mulf %12, %12 : vector<8x128xf32>
    %16 = arith.mulf %13, %13 : vector<8x128xf32>
    %17 = arith.addf %15, %16 : vector<8x128xf32>
    %18 = arith.mulf %14, %14 : vector<8x128xf32>
    %19 = arith.addf %17, %18 : vector<8x128xf32>
    %20 = math.sqrt %19 : vector<8x128xf32>
    %c0_6 = arith.constant 0 : index
    %21 = memref.load %arg1[%c0_6] : memref<1xf32, #tpu.memory_space<smem>>
    %22 = vector.broadcast %21 : f32 to vector<8x128xf32>
    %23 = arith.subf %20, %22 : vector<8x128xf32>
    %c0_7 = arith.constant 0 : index
    %c0_8 = arith.constant 0 : index
    %24 = vector.load %arg5[%c0_7, %c0_8] : memref<8x128xf32, #tpu.memory_space<vmem>>, vector<8x128xf32>
    tpu.vector_store %arg5[%c0_7, %c0_8], %23 {strides = array<i32>} : memref<8x128xf32, #tpu.memory_space<vmem>>, vector<8x128xf32>,
    return
  }
  func.func @transform_0(%arg0: i32) -> i32 {
    %c0_i32 = arith.constant 0 : i32
    %c0_i32_0 = arith.constant 0 : i32
    return %c0_i32 : i32
  }
  func.func @transform_1(%arg0: i32) -> (i32, i32) {
    %c0_i32 = arith.constant 0 : i32
    %c0_i32_0 = arith.constant 0 : i32
    %c0_i32_1 = arith.constant 0 : i32
    return %c0_i32, %c0_i32_0 : i32, i32
  }
  func.func @transform_2(%arg0: i32) -> (i32, i32) {
    %c0_i32 = arith.constant 0 : i32
    %c0_i32_0 = arith.constant 0 : i32
    %c0_i32_1 = arith.constant 0 : i32
    return %c0_i32, %c0_i32_0 : i32, i32
  }
  func.func @transform_3(%arg0: i32) -> (i32, i32) {
    %c0_i32 = arith.constant 0 : i32
    %c0_i32_0 = arith.constant 0 : i32
    return %arg0, %c0_i32 : i32, i32
  }
  func.func @transform_4(%arg0: i32) -> (i32, i32) {
    %c0_i32 = arith.constant 0 : i32
    %c0_i32_0 = arith.constant 0 : i32
    return %arg0, %c0_i32 : i32, i32
  }
}

</mosaic_0001>

<llo_original>
// kernel: tile.8
$region0: #{tile.8}
  #allocation0 [shape = 's32[1]{0}', space=sflag, size = 0x4, scoped, tag = 'scoped memory for tile.8']
  %s0 = inlined_call_operand.vmem [shape: f32[3], index: 0, kind: input, shape index: {}]
  %s1 = inlined_call_operand.vmem [shape: f32[128,3], index: 1, kind: output, shape index: {}]
  // Predicated region
  $region2: #{tile.8} parent=0 // pred_check
    _
  $region3: #{tile.8} parent=0 // pred_check_branch
    %3 = sbr.rel (0) target = $region5
  $region4: #{tile.8} parent=0 // pred_region
    _
  $region5: #{tile.8} parent=0 // pred_fallthru
    _
  %v4 = vld [vmem:[%s0] ss:$0 sm:$0xff]
  %5 = vst [vmem:[%s1] sm:$0xff] %v4
  %s6 = scalar_lea.vmem %s1, 8
  %7 = vst [vmem:[%s6] sm:$0xff] %v4
  %s8 = scalar_lea.vmem %s1, 16
  %9 = vst [vmem:[%s8] sm:$0xff] %v4
  %s10 = scalar_lea.vmem %s1, 24
  %11 = vst [vmem:[%s10] sm:$0xff] %v4
  %s12 = scalar_lea.vmem %s1, 32
  %13 = vst [vmem:[%s12] sm:$0xff] %v4
  %s14 = scalar_lea.vmem %s1, 40
  %15 = vst [vmem:[%s14] sm:$0xff] %v4
  %s16 = scalar_lea.vmem %s1, 48
  %17 = vst [vmem:[%s16] sm:$0xff] %v4
  %s18 = scalar_lea.vmem %s1, 56
  %19 = vst [vmem:[%s18] sm:$0xff] %v4
  %s20 = scalar_lea.vmem %s1, 64
  %21 = vst [vmem:[%s20] sm:$0xff] %v4
  %s22 = scalar_lea.vmem %s1, 72
  %23 = vst [vmem:[%s22] sm:$0xff] %v4
  %s24 = scalar_lea.vmem %s1, 80
  %25 = vst [vmem:[%s24] sm:$0xff] %v4
  %s26 = scalar_lea.vmem %s1, 88
  %27 = vst [vmem:[%s26] sm:$0xff] %v4
  %s28 = scalar_lea.vmem %s1, 96
  %29 = vst [vmem:[%s28] sm:$0xff] %v4
  %s30 = scalar_lea.vmem %s1, 104
  %31 = vst [vmem:[%s30] sm:$0xff] %v4
  %s32 = scalar_lea.vmem %s1, 112
  %33 = vst [vmem:[%s32] sm:$0xff] %v4
  %s34 = scalar_lea.vmem %s1, 120
  %35 = vst [vmem:[%s34] sm:$0xff] %v4

// kernel: tile.9
$region0: #{tile.9}
  %s0 = inlined_call_operand.vmem [shape: f32[128,3], index: 0, kind: input, shape index: {}]
  %s1 = inlined_call_operand.vmem [shape: f32[1,384], index: 1, kind: output, shape index: {}]
  $region1: #{tile.9} parent=0
    #allocation0 [shape = 'u8[12288]{0}', space=vmem, size = 0x3000, scoped, tag = 'scoped mem for output reshape']
    %v2 = vld [vmem:[%s0] sm:$0x1]
    %vm3 = vcmask 23552
    %4 = vst.msk [vmem:[#allocation0] sm:$0x1] %vm3, %v2
    %s5 = scalar_lea.vmem %s0, 85
    %v6 = vld [vmem:[%s5] sm:$0x1]
    %s7 = scalar_lea.vmem %s0, 85
    %v8 = vld [vmem:[%s7] sm:$0x1]
    %vm9 = vcmask 7168
    %v10 = vsel %vm9, %v8, %v6
    %11 = vrot.lane.b32.xlu0 %v10, 127
    %v12 = vpop.permute.xlu0 %11
    %vm13 = vcmask 15360
    %s14 = scalar_lea.vmem [#allocation0], 16
    %15 = vst.msk [vmem:[%s14] sm:$0x1] %vm13, %v12
    %vm16 = vcmask 1048568
    %s17 = scalar_lea.vmem [#allocation0], 8
    %18 = vst.msk [vmem:[%s17] sm:$0x1] %vm16, %v12
    %s19 = scalar_lea.vmem %s0, 42
    %v20 = vld [vmem:[%s19] sm:$0x1]
    %s21 = scalar_lea.vmem %s0, 42
    %v22 = vld [vmem:[%s21] sm:$0x1]
    %vm23 = vcmask 15360
    %v24 = vsel %vm23, %v22, %v20
    %25 = vrot.lane.b32.xlu0 %v24, 126
    %v26 = vpop.permute.xlu0 %25
    %vm27 = vcmask 7168
    %s28 = scalar_lea.vmem [#allocation0], 8
    %29 = vst.msk [vmem:[%s28] sm:$0x1] %vm27, %v26
    %vm30 = vcmask 1048560
    %31 = vst.msk [vmem:[#allocation0] sm:$0x1] %vm30, %v26
    %s32 = scalar_lea.vmem %s0, 127
    %v33 = vld [vmem:[%s32] sm:$0x1]
    %34 = vrot.lane.b32.xlu0 %v33, 125
    %v35 = vpop.permute.xlu0 %34
    %vm36 = vcmask 1048552
    %s37 = scalar_lea.vmem [#allocation0], 16
    %38 = vst.msk [vmem:[%s37] sm:$0x1] %vm36, %v35
    %s39 = scalar_lea.vmem %s0, 84
    %v40 = vld [vmem:[%s39] sm:$0x1]
    %41 = vrot.lane.b32.xlu0 %v40, 124
    %v42 = vpop.permute.xlu0 %41
    %vm43 = vcmask 1040352
    %s44 = scalar_lea.vmem [#allocation0], 8
    %45 = vst.msk [vmem:[%s44] sm:$0x1] %vm43, %v42
    %s46 = scalar_lea.vmem %s0, 41
    %v47 = vld [vmem:[%s46] sm:$0x1]
    %48 = vrot.lane.b32.xlu0 %v47, 123
    %v49 = vpop.permute.xlu0 %48
    %vm50 = vcmask 1032152
    %51 = vst.msk [vmem:[#allocation0] sm:$0x1] %vm50, %v49
    %s52 = scalar_lea.vmem %s0, 126
    %v53 = vld [vmem:[%s52] sm:$0x1]
    %54 = vrot.lane.b32.xlu0 %v53, 122
    %v55 = vpop.permute.xlu0 %54
    %vm56 = vcmask 1023952
    %s57 = scalar_lea.vmem [#allocation0], 16
    %58 = vst.msk [vmem:[%s57] sm:$0x1] %vm56, %v55
    %s59 = scalar_lea.vmem %s0, 83
    %v60 = vld [vmem:[%s59] sm:$0x1]
    %61 = vrot.lane.b32.xlu0 %v60, 121
    %v62 = vpop.permute.xlu0 %61
    %vm63 = vcmask 1015752
    %s64 = scalar_lea.vmem [#allocation0], 8
    %65 = vst.msk [vmem:[%s64] sm:$0x1] %vm63, %v62
    %s66 = scalar_lea.vmem %s0, 40
    %v67 = vld [vmem:[%s66] sm:$0x1]
    %68 = vrot.lane.b32.xlu0 %v67, 120
    %v69 = vpop.permute.xlu0 %68
    %vm70 = vcmask 1007552
    %71 = vst.msk [vmem:[#allocation0] sm:$0x1] %vm70, %v69
    %s72 = scalar_lea.vmem %s0, 125
    %v73 = vld [vmem:[%s72] sm:$0x1]
    %74 = vrot.lane.b32.xlu0 %v73, 119
    %v75 = vpop.permute.xlu0 %74
    %vm76 = vcmask 999352
    %s77 = scalar_lea.vmem [#allocation0], 16
    %78 = vst.msk [vmem:[%s77] sm:$0x1] %vm76, %v75
    %s79 = scalar_lea.vmem %s0, 82
    %v80 = vld [vmem:[%s79] sm:$0x1]
    %81 = vrot.lane.b32.xlu0 %v80, 118
    %v82 = vpop.permute.xlu0 %81
    %vm83 = vcmask 991152
    %s84 = scalar_lea.vmem [#allocation0], 8
    %85 = vst.msk [vmem:[%s84] sm:$0x1] %vm83, %v82
    %s86 = scalar_lea.vmem %s0, 39
    %v87 = vld [vmem:[%s86] sm:$0x1]
    %88 = vrot.lane.b32.xlu0 %v87, 117
    %v89 = vpop.permute.xlu0 %88
    %vm90 = vcmask 982952
    %91 = vst.msk [vmem:[#allocation0] sm:$0x1] %vm90, %v89
    %s92 = scalar_lea.vmem %s0, 124
    %v93 = vld [vmem:[%s92] sm:$0x1]
    %94 = vrot.lane.b32.xlu0 %v93, 116
    %v95 = vpop.permute.xlu0 %94
    %vm96 = vcmask 974752
    %s97 = scalar_lea.vmem [#allocation0], 16
    %98 = vst.msk [vmem:[%s97] sm:$0x1] %vm96, %v95
    %s99 = scalar_lea.vmem %s0, 81
    %v100 = vld [vmem:[%s99] sm:$0x1]
    %101 = vrot.lane.b32.xlu0 %v100, 115
    %v102 = vpop.permute.xlu0 %101
    %vm103 = vcmask 966552
    %s104 = scalar_lea.vmem [#allocation0], 8
    %105 = vst.msk [vmem:[%s104] sm:$0x1] %vm103, %v102
    %s106 = scalar_lea.vmem %s0, 38
    %v107 = vld [vmem:[%s106] sm:$0x1]
    %108 = vrot.lane.b32.xlu0 %v107, 114
    %v109 = vpop.permute.xlu0 %108
    %vm110 = vcmask 958352
    %111 = vst.msk [vmem:[#allocation0] sm:$0x1] %vm110, %v109
    %s112 = scalar_lea.vmem %s0, 123
    %v113 = vld [vmem:[%s112] sm:$0x1]
    %114 = vrot.lane.b32.xlu0 %v113, 113
    %v115 = vpop.permute.xlu0 %114
    %vm116 = vcmask 950152
    %s117 = scalar_lea.vmem [#allocation0], 16
    %118 = vst.msk [vmem:[%s117] sm:$0x1] %vm116, %v115
    %s119 = scalar_lea.vmem %s0, 80
    %v120 = vld [vmem:[%s119] sm:$0x1]
    %121 = vrot.lane.b32.xlu0 %v120, 112
    %v122 = vpop.permute.xlu0 %121
    %vm123 = vcmask 941952
    %s124 = scalar_lea.vmem [#allocation0], 8
    %125 = vst.msk [vmem:[%s124] sm:$0x1] %vm123, %v122
    %s126 = scalar_lea.vmem %s0, 37
    %v127 = vld [vmem:[%s126] sm:$0x1]
    %128 = vrot.lane.b32.xlu0 %v127, 111
    %v129 = vpop.permute.xlu0 %128
    %vm130 = vcmask 933752
    %131 = vst.msk [vmem:[#allocation0] sm:$0x1] %vm130, %v129
    %s132 = scalar_lea.vmem %s0, 122
    %v133 = vld [vmem:[%s132] sm:$0x1]
    %134 = vrot.lane.b32.xlu0 %v133, 110
    %v135 = vpop.permute.xlu0 %134
    %vm136 = vcmask 925552
    %s137 = scalar_lea.vmem [#allocation0], 16
    %138 = vst.msk [vmem:[%s137] sm:$0x1] %vm136, %v135
    %s139 = scalar_lea.vmem %s0, 79
    %v140 = vld [vmem:[%s139] sm:$0x1]
    %141 = vrot.lane.b32.xlu0 %v140, 109
    %v142 = vpop.permute.xlu0 %141
    %vm143 = vcmask 917352
    %s144 = scalar_lea.vmem [#allocation0], 8
    %145 = vst.msk [vmem:[%s144] sm:$0x1] %vm143, %v142
    %s146 = scalar_lea.vmem %s0, 36
    %v147 = vld [vmem:[%s146] sm:$0x1]
    %148 = vrot.lane.b32.xlu0 %v147, 108
    %v149 = vpop.permute.xlu0 %148
    %vm150 = vcmask 909152
    %151 = vst.msk [vmem:[#allocation0] sm:$0x1] %vm150, %v149
    %s152 = scalar_lea.vmem %s0, 121
    %v153 = vld [vmem:[%s152] sm:$0x1]
    %154 = vrot.lane.b32.xlu0 %v153, 107
    %v155 = vpop.permute.xlu0 %154
    %vm156 = vcmask 900952
    %s157 = scalar_lea.vmem [#allocation0], 16
    %158 = vst.msk [vmem:[%s157] sm:$0x1] %vm156, %v155
    %s159 = scalar_lea.vmem %s0, 78
    %v160 = vld [vmem:[%s159] sm:$0x1]
    %161 = vrot.lane.b32.xlu0 %v160, 106
    %v162 = vpop.permute.xlu0 %161
    %vm163 = vcmask 892752
    %s164 = scalar_lea.vmem [#allocation0], 8
    %165 = vst.msk [vmem:[%s164] sm:$0x1] %vm163, %v162
    %s166 = scalar_lea.vmem %s0, 35
    %v167 = vld [vmem:[%s166] sm:$0x1]
    %168 = vrot.lane.b32.xlu0 %v167, 105
    %v169 = vpop.permute.xlu0 %168
    %vm170 = vcmask 884552
    %171 = vst.msk [vmem:[#allocation0] sm:$0x1] %vm170, %v169
    %s172 = scalar_lea.vmem %s0, 120
    %v173 = vld [vmem:[%s172] sm:$0x1]
    %174 = vrot.lane.b32.xlu0 %v173, 104
    %v175 = vpop.permute.xlu0 %174
    %vm176 = vcmask 876352
    %s177 = scalar_lea.vmem [#allocation0], 16
    %178 = vst.msk [vmem:[%s177] sm:$0x1] %vm176, %v175
    %s179 = scalar_lea.vmem %s0, 77
    %v180 = vld [vmem:[%s179] sm:$0x1]
    %181 = vrot.lane.b32.xlu0 %v180, 103
    %v182 = vpop.permute.xlu0 %181
    %vm183 = vcmask 868152
    %s184 = scalar_lea.vmem [#allocation0], 8
    %185 = vst.msk [vmem:[%s184] sm:$0x1] %vm183, %v182
    %s186 = scalar_lea.vmem %s0, 34
    %v187 = vld [vmem:[%s186] sm:$0x1]
    %188 = vrot.lane.b32.xlu0 %v187, 102
    %v189 = vpop.permute.xlu0 %188
    %vm190 = vcmask 859952
    %191 = vst.msk [vmem:[#allocation0] sm:$0x1] %vm190, %v189
    %s192 = scalar_lea.vmem %s0, 119
    %v193 = vld [vmem:[%s192] sm:$0x1]
    %194 = vrot.lane.b32.xlu0 %v193, 101
    %v195 = vpop.permute.xlu0 %194
    %vm196 = vcmask 851752
    %s197 = scalar_lea.vmem [#allocation0], 16
    %198 = vst.msk [vmem:[%s197] sm:$0x1] %vm196, %v195
    %s199 = scalar_lea.vmem %s0, 76
    %v200 = vld [vmem:[%s199] sm:$0x1]
    %201 = vrot.lane.b32.xlu0 %v200, 100
    %v202 = vpop.permute.xlu0 %201
    %vm203 = vcmask 843552
    %s204 = scalar_lea.vmem [#allocation0], 8
    %205 = vst.msk [vmem:[%s204] sm:$0x1] %vm203, %v202
    %s206 = scalar_lea.vmem %s0, 33
    %v207 = vld [vmem:[%s206] sm:$0x1]
    %208 = vrot.lane.b32.xlu0 %v207, 99
    %v209 = vpop.permute.xlu0 %208
    %vm210 = vcmask 835352
    %211 = vst.msk [vmem:[#allocation0] sm:$0x1] %vm210, %v209
    %s212 = scalar_lea.vmem %s0, 118
    %v213 = vld [vmem:[%s212] sm:$0x1]
    %214 = vrot.lane.b32.xlu0 %v213, 98
    %v215 = vpop.permute.xlu0 %214
    %vm216 = vcmask 827152
    %s217 = scalar_lea.vmem [#allocation0], 16
    %218 = vst.msk [vmem:[%s217] sm:$0x1] %vm216, %v215
    %s219 = scalar_lea.vmem %s0, 75
    %v220 = vld [vmem:[%s219] sm:$0x1]
    %221 = vrot.lane.b32.xlu0 %v220, 97
    %v222 = vpop.permute.xlu0 %221
    %vm223 = vcmask 818952
    %s224 = scalar_lea.vmem [#allocation0], 8
    %225 = vst.msk [vmem:[%s224] sm:$0x1] %vm223, %v222
    %s226 = scalar_lea.vmem %s0, 32
    %v227 = vld [vmem:[%s226] sm:$0x1]
    %228 = vrot.lane.b32.xlu0 %v227, 96
    %v229 = vpop.permute.xlu0 %228
    %vm230 = vcmask 810752
    %231 = vst.msk [vmem:[#allocation0] sm:$0x1] %vm230, %v229
    %s232 = scalar_lea.vmem %s0, 117
    %v233 = vld [vmem:[%s232] sm:$0x1]
    %234 = vrot.lane.b32.xlu0 %v233, 95
    %v235 = vpop.permute.xlu0 %234
    %vm236 = vcmask 802552
    %s237 = scalar_lea.vmem [#allocation0], 16
    %238 = vst.msk [vmem:[%s237] sm:$0x1] %vm236, %v235
    %s239 = scalar_lea.vmem %s0, 74
    %v240 = vld [vmem:[%s239] sm:$0x1]
    %241 = vrot.lane.b32.xlu0 %v240, 94
    %v242 = vpop.permute.xlu0 %241
    %vm243 = vcmask 794352
    %s244 = scalar_lea.vmem [#allocation0], 8
    %245 = vst.msk [vmem:[%s244] sm:$0x1] %vm243, %v242
    %s246 = scalar_lea.vmem %s0, 31
    %v247 = vld [vmem:[%s246] sm:$0x1]
    %248 = vrot.lane.b32.xlu0 %v247, 93
    %v249 = vpop.permute.xlu0 %248
    %vm250 = vcmask 786152
    %251 = vst.msk [vmem:[#allocation0] sm:$0x1] %vm250, %v249
    %s252 = scalar_lea.vmem %s0, 116
    %v253 = vld [vmem:[%s252] sm:$0x1]
    %254 = vrot.lane.b32.xlu0 %v253, 92
    %v255 = vpop.permute.xlu0 %254
    %vm256 = vcmask 777952
    %s257 = scalar_lea.vmem [#allocation0], 16
    %258 = vst.msk [vmem:[%s257] sm:$0x1] %vm256, %v255
    %s259 = scalar_lea.vmem %s0, 73
    %v260 = vld [vmem:[%s259] sm:$0x1]
    %261 = vrot.lane.b32.xlu0 %v260, 91
    %v262 = vpop.permute.xlu0 %261
    %vm263 = vcmask 769752
    %s264 = scalar_lea.vmem [#allocation0], 8
    %265 = vst.msk [vmem:[%s264] sm:$0x1] %vm263, %v262
    %s266 = scalar_lea.vmem %s0, 30
    %v267 = vld [vmem:[%s266] sm:$0x1]
    %268 = vrot.lane.b32.xlu0 %v267, 90
    %v269 = vpop.permute.xlu0 %268
    %vm270 = vcmask 761552
    %271 = vst.msk [vmem:[#allocation0] sm:$0x1] %vm270, %v269
    %s272 = scalar_lea.vmem %s0, 115
    %v273 = vld [vmem:[%s272] sm:$0x1]
    %274 = vrot.lane.b32.xlu0 %v273, 89
    %v275 = vpop.permute.xlu0 %274
    %vm276 = vcmask 753352
    %s277 = scalar_lea.vmem [#allocation0], 16
    %278 = vst.msk [vmem:[%s277] sm:$0x1] %vm276, %v275
    %s279 = scalar_lea.vmem %s0, 72
    %v280 = vld [vmem:[%s279] sm:$0x1]
    %281 = vrot.lane.b32.xlu0 %v280, 88
    %v282 = vpop.permute.xlu0 %281
    %vm283 = vcmask 745152
    %s284 = scalar_lea.vmem [#allocation0], 8
    %285 = vst.msk [vmem:[%s284] sm:$0x1] %vm283, %v282
    %s286 = scalar_lea.vmem %s0, 29
    %v287 = vld [vmem:[%s286] sm:$0x1]
    %288 = vrot.lane.b32.xlu0 %v287, 87
    %v289 = vpop.permute.xlu0 %288
    %vm290 = vcmask 736952
    %291 = vst.msk [vmem:[#allocation0] sm:$0x1] %vm290, %v289
    %s292 = scalar_lea.vmem %s0, 114
    %v293 = vld [vmem:[%s292] sm:$0x1]
    %294 = vrot.lane.b32.xlu0 %v293, 86
    %v295 = vpop.permute.xlu0 %294
    %vm296 = vcmask 728752
    %s297 = scalar_lea.vmem [#allocation0], 16
    %298 = vst.msk [vmem:[%s297] sm:$0x1] %vm296, %v295
    %s299 = scalar_lea.vmem %s0, 71
    %v300 = vld [vmem:[%s299] sm:$0x1]
    %301 = vrot.lane.b32.xlu0 %v300, 85
    %v302 = vpop.permute.xlu0 %301
    %vm303 = vcmask 720552
    %s304 = scalar_lea.vmem [#allocation0], 8
    %305 = vst.msk [vmem:[%s304] sm:$0x1] %vm303, %v302
    %s306 = scalar_lea.vmem %s0, 28
    %v307 = vld [vmem:[%s306] sm:$0x1]
    %308 = vrot.lane.b32.xlu0 %v307, 84
    %v309 = vpop.permute.xlu0 %308
    %vm310 = vcmask 712352
    %311 = vst.msk [vmem:[#allocation0] sm:$0x1] %vm310, %v309
    %s312 = scalar_lea.vmem %s0, 113
    %v313 = vld [vmem:[%s312] sm:$0x1]
    %314 = vrot.lane.b32.xlu0 %v313, 83
    %v315 = vpop.permute.xlu0 %314
    %vm316 = vcmask 704152
    %s317 = scalar_lea.vmem [#allocation0], 16
    %318 = vst.msk [vmem:[%s317] sm:$0x1] %vm316, %v315
    %s319 = scalar_lea.vmem %s0, 70
    %v320 = vld [vmem:[%s319] sm:$0x1]
    %321 = vrot.lane.b32.xlu0 %v320, 82
    %v322 = vpop.permute.xlu0 %321
    %vm323 = vcmask 695952
    %s324 = scalar_lea.vmem [#allocation0], 8
    %325 = vst.msk [vmem:[%s324] sm:$0x1] %vm323, %v322
    %s326 = scalar_lea.vmem %s0, 27
    %v327 = vld [vmem:[%s326] sm:$0x1]
    %328 = vrot.lane.b32.xlu0 %v327, 81
    %v329 = vpop.permute.xlu0 %328
    %vm330 = vcmask 687752
    %331 = vst.msk [vmem:[#allocation0] sm:$0x1] %vm330, %v329
    %s332 = scalar_lea.vmem %s0, 112
    %v333 = vld [vmem:[%s332] sm:$0x1]
    %334 = vrot.lane.b32.xlu0 %v333, 80
    %v335 = vpop.permute.xlu0 %334
    %vm336 = vcmask 679552
    %s337 = scalar_lea.vmem [#allocation0], 16
    %338 = vst.msk [vmem:[%s337] sm:$0x1] %vm336, %v335
    %s339 = scalar_lea.vmem %s0, 69
    %v340 = vld [vmem:[%s339] sm:$0x1]
    %341 = vrot.lane.b32.xlu0 %v340, 79
    %v342 = vpop.permute.xlu0 %341
    %vm343 = vcmask 671352
    %s344 = scalar_lea.vmem [#allocation0], 8
    %345 = vst.msk [vmem:[%s344] sm:$0x1] %vm343, %v342
    %s346 = scalar_lea.vmem %s0, 26
    %v347 = vld [vmem:[%s346] sm:$0x1]
    %348 = vrot.lane.b32.xlu0 %v347, 78
    %v349 = vpop.permute.xlu0 %348
    %vm350 = vcmask 663152
    %351 = vst.msk [vmem:[#allocation0] sm:$0x1] %vm350, %v349
    %s352 = scalar_lea.vmem %s0, 111
    %v353 = vld [vmem:[%s352] sm:$0x1]
    %354 = vrot.lane.b32.xlu0 %v353, 77
    %v355 = vpop.permute.xlu0 %354
    %vm356 = vcmask 654952
    %s357 = scalar_lea.vmem [#allocation0], 16
    %358 = vst.msk [vmem:[%s357] sm:$0x1] %vm356, %v355
    %s359 = scalar_lea.vmem %s0, 68
    %v360 = vld [vmem:[%s359] sm:$0x1]
    %361 = vrot.lane.b32.xlu0 %v360, 76
    %v362 = vpop.permute.xlu0 %361
    %vm363 = vcmask 646752
    %s364 = scalar_lea.vmem [#allocation0], 8
    %365 = vst.msk [vmem:[%s364] sm:$0x1] %vm363, %v362
    %s366 = scalar_lea.vmem %s0, 25
    %v367 = vld [vmem:[%s366] sm:$0x1]
    %368 = vrot.lane.b32.xlu0 %v367, 75
    %v369 = vpop.permute.xlu0 %368
    %vm370 = vcmask 638552
    %371 = vst.msk [vmem:[#allocation0] sm:$0x1] %vm370, %v369
    %s372 = scalar_lea.vmem %s0, 110
    %v373 = vld [vmem:[%s372] sm:$0x1]
    %374 = vrot.lane.b32.xlu0 %v373, 74
    %v375 = vpop.permute.xlu0 %374
    %vm376 = vcmask 630352
    %s377 = scalar_lea.vmem [#allocation0], 16
    %378 = vst.msk [vmem:[%s377] sm:$0x1] %vm376, %v375
    %s379 = scalar_lea.vmem %s0, 67
    %v380 = vld [vmem:[%s379] sm:$0x1]
    %381 = vrot.lane.b32.xlu0 %v380, 73
    %v382 = vpop.permute.xlu0 %381
    %vm383 = vcmask 622152
    %s384 = scalar_lea.vmem [#allocation0], 8
    %385 = vst.msk [vmem:[%s384] sm:$0x1] %vm383, %v382
    %s386 = scalar_lea.vmem %s0, 24
    %v387 = vld [vmem:[%s386] sm:$0x1]
    %388 = vrot.lane.b32.xlu0 %v387, 72
    %v389 = vpop.permute.xlu0 %388
    %vm390 = vcmask 613952
    %391 = vst.msk [vmem:[#allocation0] sm:$0x1] %vm390, %v389
    %s392 = scalar_lea.vmem %s0, 109
    %v393 = vld [vmem:[%s392] sm:$0x1]
    %394 = vrot.lane.b32.xlu0 %v393, 71
    %v395 = vpop.permute.xlu0 %394
    %vm396 = vcmask 605752
    %s397 = scalar_lea.vmem [#allocation0], 16
    %398 = vst.msk [vmem:[%s397] sm:$0x1] %vm396, %v395
    %s399 = scalar_lea.vmem %s0, 66
    %v400 = vld [vmem:[%s399] sm:$0x1]
    %401 = vrot.lane.b32.xlu0 %v400, 70
    %v402 = vpop.permute.xlu0 %401
    %vm403 = vcmask 597552
    %s404 = scalar_lea.vmem [#allocation0], 8
    %405 = vst.msk [vmem:[%s404] sm:$0x1] %vm403, %v402
    %s406 = scalar_lea.vmem %s0, 23
    %v407 = vld [vmem:[%s406] sm:$0x1]
    %408 = vrot.lane.b32.xlu0 %v407, 69
    %v409 = vpop.permute.xlu0 %408
    %vm410 = vcmask 589352
    %411 = vst.msk [vmem:[#allocation0] sm:$0x1] %vm410, %v409
    %s412 = scalar_lea.vmem %s0, 108
    %v413 = vld [vmem:[%s412] sm:$0x1]
    %414 = vrot.lane.b32.xlu0 %v413, 68
    %v415 = vpop.permute.xlu0 %414
    %vm416 = vcmask 581152
    %s417 = scalar_lea.vmem [#allocation0], 16
    %418 = vst.msk [vmem:[%s417] sm:$0x1] %vm416, %v415
    %s419 = scalar_lea.vmem %s0, 65
    %v420 = vld [vmem:[%s419] sm:$0x1]
    %421 = vrot.lane.b32.xlu0 %v420, 67
    %v422 = vpop.permute.xlu0 %421
    %vm423 = vcmask 572952
    %s424 = scalar_lea.vmem [#allocation0], 8
    %425 = vst.msk [vmem:[%s424] sm:$0x1] %vm423, %v422
    %s426 = scalar_lea.vmem %s0, 22
    %v427 = vld [vmem:[%s426] sm:$0x1]
    %428 = vrot.lane.b32.xlu0 %v427, 66
    %v429 = vpop.permute.xlu0 %428
    %vm430 = vcmask 564752
    %431 = vst.msk [vmem:[#allocation0] sm:$0x1] %vm430, %v429
    %s432 = scalar_lea.vmem %s0, 107
    %v433 = vld [vmem:[%s432] sm:$0x1]
    %434 = vrot.lane.b32.xlu0 %v433, 65
    %v435 = vpop.permute.xlu0 %434
    %vm436 = vcmask 556552
    %s437 = scalar_lea.vmem [#allocation0], 16
    %438 = vst.msk [vmem:[%s437] sm:$0x1] %vm436, %v435
    %s439 = scalar_lea.vmem %s0, 64
    %v440 = vld [vmem:[%s439] sm:$0x1]
    %441 = vrot.lane.b32.xlu0 %v440, 64
    %v442 = vpop.permute.xlu0 %441
    %vm443 = vcmask 548352
    %s444 = scalar_lea.vmem [#allocation0], 8
    %445 = vst.msk [vmem:[%s444] sm:$0x1] %vm443, %v442
    %s446 = scalar_lea.vmem %s0, 21
    %v447 = vld [vmem:[%s446] sm:$0x1]
    %448 = vrot.lane.b32.xlu0 %v447, 63
    %v449 = vpop.permute.xlu0 %448
    %vm450 = vcmask 540152
    %451 = vst.msk [vmem:[#allocation0] sm:$0x1] %vm450, %v449
    %s452 = scalar_lea.vmem %s0, 106
    %v453 = vld [vmem:[%s452] sm:$0x1]
    %454 = vrot.lane.b32.xlu0 %v453, 62
    %v455 = vpop.permute.xlu0 %454
    %vm456 = vcmask 531952
    %s457 = scalar_lea.vmem [#allocation0], 16
    %458 = vst.msk [vmem:[%s457] sm:$0x1] %vm456, %v455
    %s459 = scalar_lea.vmem %s0, 63
    %v460 = vld [vmem:[%s459] sm:$0x1]
    %461 = vrot.lane.b32.xlu0 %v460, 61
    %v462 = vpop.permute.xlu0 %461
    %vm463 = vcmask 523752
    %s464 = scalar_lea.vmem [#allocation0], 8
    %465 = vst.msk [vmem:[%s464] sm:$0x1] %vm463, %v462
    %s466 = scalar_lea.vmem %s0, 20
    %v467 = vld [vmem:[%s466] sm:$0x1]
    %468 = vrot.lane.b32.xlu0 %v467, 60
    %v469 = vpop.permute.xlu0 %468
    %vm470 = vcmask 515552
    %471 = vst.msk [vmem:[#allocation0] sm:$0x1] %vm470, %v469
    %s472 = scalar_lea.vmem %s0, 105
    %v473 = vld [vmem:[%s472] sm:$0x1]
    %474 = vrot.lane.b32.xlu0 %v473, 59
    %v475 = vpop.permute.xlu0 %474
    %vm476 = vcmask 507352
    %s477 = scalar_lea.vmem [#allocation0], 16
    %478 = vst.msk [vmem:[%s477] sm:$0x1] %vm476, %v475
    %s479 = scalar_lea.vmem %s0, 62
    %v480 = vld [vmem:[%s479] sm:$0x1]
    %481 = vrot.lane.b32.xlu0 %v480, 58
    %v482 = vpop.permute.xlu0 %481
    %vm483 = vcmask 499152
    %s484 = scalar_lea.vmem [#allocation0], 8
    %485 = vst.msk [vmem:[%s484] sm:$0x1] %vm483, %v482
    %s486 = scalar_lea.vmem %s0, 19
    %v487 = vld [vmem:[%s486] sm:$0x1]
    %488 = vrot.lane.b32.xlu0 %v487, 57
    %v489 = vpop.permute.xlu0 %488
    %vm490 = vcmask 490952
    %491 = vst.msk [vmem:[#allocation0] sm:$0x1] %vm490, %v489
    %s492 = scalar_lea.vmem %s0, 104
    %v493 = vld [vmem:[%s492] sm:$0x1]
    %494 = vrot.lane.b32.xlu0 %v493, 56
    %v495 = vpop.permute.xlu0 %494
    %vm496 = vcmask 482752
    %s497 = scalar_lea.vmem [#allocation0], 16
    %498 = vst.msk [vmem:[%s497] sm:$0x1] %vm496, %v495
    %s499 = scalar_lea.vmem %s0, 61
    %v500 = vld [vmem:[%s499] sm:$0x1]
    %501 = vrot.lane.b32.xlu0 %v500, 55
    %v502 = vpop.permute.xlu0 %501
    %vm503 = vcmask 474552
    %s504 = scalar_lea.vmem [#allocation0], 8
    %505 = vst.msk [vmem:[%s504] sm:$0x1] %vm503, %v502
    %s506 = scalar_lea.vmem %s0, 18
    %v507 = vld [vmem:[%s506] sm:$0x1]
    %508 = vrot.lane.b32.xlu0 %v507, 54
    %v509 = vpop.permute.xlu0 %508
    %vm510 = vcmask 466352
    %511 = vst.msk [vmem:[#allocation0] sm:$0x1] %vm510, %v509
    %s512 = scalar_lea.vmem %s0, 103
    %v513 = vld [vmem:[%s512] sm:$0x1]
    %514 = vrot.lane.b32.xlu0 %v513, 53
    %v515 = vpop.permute.xlu0 %514
    %vm516 = vcmask 458152
    %s517 = scalar_lea.vmem [#allocation0], 16
    %518 = vst.msk [vmem:[%s517] sm:$0x1] %vm516, %v515
    %s519 = scalar_lea.vmem %s0, 60
    %v520 = vld [vmem:[%s519] sm:$0x1]
    %521 = vrot.lane.b32.xlu0 %v520, 52
    %v522 = vpop.permute.xlu0 %521
    %vm523 = vcmask 449952
    %s524 = scalar_lea.vmem [#allocation0], 8
    %525 = vst.msk [vmem:[%s524] sm:$0x1] %vm523, %v522
    %s526 = scalar_lea.vmem %s0, 17
    %v527 = vld [vmem:[%s526] sm:$0x1]
    %528 = vrot.lane.b32.xlu0 %v527, 51
    %v529 = vpop.permute.xlu0 %528
    %vm530 = vcmask 441752
    %531 = vst.msk [vmem:[#allocation0] sm:$0x1] %vm530, %v529
    %s532 = scalar_lea.vmem %s0, 102
    %v533 = vld [vmem:[%s532] sm:$0x1]
    %534 = vrot.lane.b32.xlu0 %v533, 50
    %v535 = vpop.permute.xlu0 %534
    %vm536 = vcmask 433552
    %s537 = scalar_lea.vmem [#allocation0], 16
    %538 = vst.msk [vmem:[%s537] sm:$0x1] %vm536, %v535
    %s539 = scalar_lea.vmem %s0, 59
    %v540 = vld [vmem:[%s539] sm:$0x1]
    %541 = vrot.lane.b32.xlu0 %v540, 49
    %v542 = vpop.permute.xlu0 %541
    %vm543 = vcmask 425352
    %s544 = scalar_lea.vmem [#allocation0], 8
    %545 = vst.msk [vmem:[%s544] sm:$0x1] %vm543, %v542
    %s546 = scalar_lea.vmem %s0, 16
    %v547 = vld [vmem:[%s546] sm:$0x1]
    %548 = vrot.lane.b32.xlu0 %v547, 48
    %v549 = vpop.permute.xlu0 %548
    %vm550 = vcmask 417152
    %551 = vst.msk [vmem:[#allocation0] sm:$0x1] %vm550, %v549
    %s552 = scalar_lea.vmem %s0, 101
    %v553 = vld [vmem:[%s552] sm:$0x1]
    %554 = vrot.lane.b32.xlu0 %v553, 47
    %v555 = vpop.permute.xlu0 %554
    %vm556 = vcmask 408952
    %s557 = scalar_lea.vmem [#allocation0], 16
    %558 = vst.msk [vmem:[%s557] sm:$0x1] %vm556, %v555
    %s559 = scalar_lea.vmem %s0, 58
    %v560 = vld [vmem:[%s559] sm:$0x1]
    %561 = vrot.lane.b32.xlu0 %v560, 46
    %v562 = vpop.permute.xlu0 %561
    %vm563 = vcmask 400752
    %s564 = scalar_lea.vmem [#allocation0], 8
    %565 = vst.msk [vmem:[%s564] sm:$0x1] %vm563, %v562
    %s566 = scalar_lea.vmem %s0, 15
    %v567 = vld [vmem:[%s566] sm:$0x1]
    %568 = vrot.lane.b32.xlu0 %v567, 45
    %v569 = vpop.permute.xlu0 %568
    %vm570 = vcmask 392552
    %571 = vst.msk [vmem:[#allocation0] sm:$0x1] %vm570, %v569
    %s572 = scalar_lea.vmem %s0, 100
    %v573 = vld [vmem:[%s572] sm:$0x1]
    %574 = vrot.lane.b32.xlu0 %v573, 44
    %v575 = vpop.permute.xlu0 %574
    %vm576 = vcmask 384352
    %s577 = scalar_lea.vmem [#allocation0], 16
    %578 = vst.msk [vmem:[%s577] sm:$0x1] %vm576, %v575
    %s579 = scalar_lea.vmem %s0, 57
    %v580 = vld [vmem:[%s579] sm:$0x1]
    %581 = vrot.lane.b32.xlu0 %v580, 43
    %v582 = vpop.permute.xlu0 %581
    %vm583 = vcmask 376152
    %s584 = scalar_lea.vmem [#allocation0], 8
    %585 = vst.msk [vmem:[%s584] sm:$0x1] %vm583, %v582
    %s586 = scalar_lea.vmem %s0, 14
    %v587 = vld [vmem:[%s586] sm:$0x1]
    %588 = vrot.lane.b32.xlu0 %v587, 42
    %v589 = vpop.permute.xlu0 %588
    %vm590 = vcmask 367952
    %591 = vst.msk [vmem:[#allocation0] sm:$0x1] %vm590, %v589
    %s592 = scalar_lea.vmem %s0, 99
    %v593 = vld [vmem:[%s592] sm:$0x1]
    %594 = vrot.lane.b32.xlu0 %v593, 41
    %v595 = vpop.permute.xlu0 %594
    %vm596 = vcmask 359752
    %s597 = scalar_lea.vmem [#allocation0], 16
    %598 = vst.msk [vmem:[%s597] sm:$0x1] %vm596, %v595
    %s599 = scalar_lea.vmem %s0, 56
    %v600 = vld [vmem:[%s599] sm:$0x1]
    %601 = vrot.lane.b32.xlu0 %v600, 40
    %v602 = vpop.permute.xlu0 %601
    %vm603 = vcmask 351552
    %s604 = scalar_lea.vmem [#allocation0], 8
    %605 = vst.msk [vmem:[%s604] sm:$0x1] %vm603, %v602
    %s606 = scalar_lea.vmem %s0, 13
    %v607 = vld [vmem:[%s606] sm:$0x1]
    %608 = vrot.lane.b32.xlu0 %v607, 39
    %v609 = vpop.permute.xlu0 %608
    %vm610 = vcmask 343352
    %611 = vst.msk [vmem:[#allocation0] sm:$0x1] %vm610, %v609
    %s612 = scalar_lea.vmem %s0, 98
    %v613 = vld [vmem:[%s612] sm:$0x1]
    %614 = vrot.lane.b32.xlu0 %v613, 38
    %v615 = vpop.permute.xlu0 %614
    %vm616 = vcmask 335152
    %s617 = scalar_lea.vmem [#allocation0], 16
    %618 = vst.msk [vmem:[%s617] sm:$0x1] %vm616, %v615
    %s619 = scalar_lea.vmem %s0, 55
    %v620 = vld [vmem:[%s619] sm:$0x1]
    %621 = vrot.lane.b32.xlu0 %v620, 37
    %v622 = vpop.permute.xlu0 %621
    %vm623 = vcmask 326952
    %s624 = scalar_lea.vmem [#allocation0], 8
    %625 = vst.msk [vmem:[%s624] sm:$0x1] %vm623, %v622
    %s626 = scalar_lea.vmem %s0, 12
    %v627 = vld [vmem:[%s626] sm:$0x1]
    %628 = vrot.lane.b32.xlu0 %v627, 36
    %v629 = vpop.permute.xlu0 %628
    %vm630 = vcmask 318752
    %631 = vst.msk [vmem:[#allocation0] sm:$0x1] %vm630, %v629
    %s632 = scalar_lea.vmem %s0, 97
    %v633 = vld [vmem:[%s632] sm:$0x1]
    %634 = vrot.lane.b32.xlu0 %v633, 35
    %v635 = vpop.permute.xlu0 %634
    %vm636 = vcmask 310552
    %s637 = scalar_lea.vmem [#allocation0], 16
    %638 = vst.msk [vmem:[%s637] sm:$0x1] %vm636, %v635
    %s639 = scalar_lea.vmem %s0, 54
    %v640 = vld [vmem:[%s639] sm:$0x1]
    %641 = vrot.lane.b32.xlu0 %v640, 34
    %v642 = vpop.permute.xlu0 %641
    %vm643 = vcmask 302352
    %s644 = scalar_lea.vmem [#allocation0], 8
    %645 = vst.msk [vmem:[%s644] sm:$0x1] %vm643, %v642
    %s646 = scalar_lea.vmem %s0, 11
    %v647 = vld [vmem:[%s646] sm:$0x1]
    %648 = vrot.lane.b32.xlu0 %v647, 33
    %v649 = vpop.permute.xlu0 %648
    %vm650 = vcmask 294152
    %651 = vst.msk [vmem:[#allocation0] sm:$0x1] %vm650, %v649
    %s652 = scalar_lea.vmem %s0, 96
    %v653 = vld [vmem:[%s652] sm:$0x1]
    %654 = vrot.lane.b32.xlu0 %v653, 32
    %v655 = vpop.permute.xlu0 %654
    %vm656 = vcmask 285952
    %s657 = scalar_lea.vmem [#allocation0], 16
    %658 = vst.msk [vmem:[%s657] sm:$0x1] %vm656, %v655
    %s659 = scalar_lea.vmem %s0, 53
    %v660 = vld [vmem:[%s659] sm:$0x1]
    %661 = vrot.lane.b32.xlu0 %v660, 31
    %v662 = vpop.permute.xlu0 %661
    %vm663 = vcmask 277752
    %s664 = scalar_lea.vmem [#allocation0], 8
    %665 = vst.msk [vmem:[%s664] sm:$0x1] %vm663, %v662
    %s666 = scalar_lea.vmem %s0, 10
    %v667 = vld [vmem:[%s666] sm:$0x1]
    %668 = vrot.lane.b32.xlu0 %v667, 30
    %v669 = vpop.permute.xlu0 %668
    %vm670 = vcmask 269552
    %671 = vst.msk [vmem:[#allocation0] sm:$0x1] %vm670, %v669
    %s672 = scalar_lea.vmem %s0, 95
    %v673 = vld [vmem:[%s672] sm:$0x1]
    %674 = vrot.lane.b32.xlu0 %v673, 29
    %v675 = vpop.permute.xlu0 %674
    %vm676 = vcmask 261352
    %s677 = scalar_lea.vmem [#allocation0], 16
    %678 = vst.msk [vmem:[%s677] sm:$0x1] %vm676, %v675
    %s679 = scalar_lea.vmem %s0, 52
    %v680 = vld [vmem:[%s679] sm:$0x1]
    %681 = vrot.lane.b32.xlu0 %v680, 28
    %v682 = vpop.permute.xlu0 %681
    %vm683 = vcmask 253152
    %s684 = scalar_lea.vmem [#allocation0], 8
    %685 = vst.msk [vmem:[%s684] sm:$0x1] %vm683, %v682
    %s686 = scalar_lea.vmem %s0, 9
    %v687 = vld [vmem:[%s686] sm:$0x1]
    %688 = vrot.lane.b32.xlu0 %v687, 27
    %v689 = vpop.permute.xlu0 %688
    %vm690 = vcmask 244952
    %691 = vst.msk [vmem:[#allocation0] sm:$0x1] %vm690, %v689
    %s692 = scalar_lea.vmem %s0, 94
    %v693 = vld [vmem:[%s692] sm:$0x1]
    %694 = vrot.lane.b32.xlu0 %v693, 26
    %v695 = vpop.permute.xlu0 %694
    %vm696 = vcmask 236752
    %s697 = scalar_lea.vmem [#allocation0], 16
    %698 = vst.msk [vmem:[%s697] sm:$0x1] %vm696, %v695
    %s699 = scalar_lea.vmem %s0, 51
    %v700 = vld [vmem:[%s699] sm:$0x1]
    %701 = vrot.lane.b32.xlu0 %v700, 25
    %v702 = vpop.permute.xlu0 %701
    %vm703 = vcmask 228552
    %s704 = scalar_lea.vmem [#allocation0], 8
    %705 = vst.msk [vmem:[%s704] sm:$0x1] %vm703, %v702
    %s706 = scalar_lea.vmem %s0, 8
    %v707 = vld [vmem:[%s706] sm:$0x1]
    %708 = vrot.lane.b32.xlu0 %v707, 24
    %v709 = vpop.permute.xlu0 %708
    %vm710 = vcmask 220352
    %711 = vst.msk [vmem:[#allocation0] sm:$0x1] %vm710, %v709
    %s712 = scalar_lea.vmem %s0, 93
    %v713 = vld [vmem:[%s712] sm:$0x1]
    %714 = vrot.lane.b32.xlu0 %v713, 23
    %v715 = vpop.permute.xlu0 %714
    %vm716 = vcmask 212152
    %s717 = scalar_lea.vmem [#allocation0], 16
    %718 = vst.msk [vmem:[%s717] sm:$0x1] %vm716, %v715
    %s719 = scalar_lea.vmem %s0, 50
    %v720 = vld [vmem:[%s719] sm:$0x1]
    %721 = vrot.lane.b32.xlu0 %v720, 22
    %v722 = vpop.permute.xlu0 %721
    %vm723 = vcmask 203952
    %s724 = scalar_lea.vmem [#allocation0], 8
    %725 = vst.msk [vmem:[%s724] sm:$0x1] %vm723, %v722
    %s726 = scalar_lea.vmem %s0, 7
    %v727 = vld [vmem:[%s726] sm:$0x1]
    %728 = vrot.lane.b32.xlu0 %v727, 21
    %v729 = vpop.permute.xlu0 %728
    %vm730 = vcmask 195752
    %731 = vst.msk [vmem:[#allocation0] sm:$0x1] %vm730, %v729
    %s732 = scalar_lea.vmem %s0, 92
    %v733 = vld [vmem:[%s732] sm:$0x1]
    %734 = vrot.lane.b32.xlu0 %v733, 20
    %v735 = vpop.permute.xlu0 %734
    %vm736 = vcmask 187552
    %s737 = scalar_lea.vmem [#allocation0], 16
    %738 = vst.msk [vmem:[%s737] sm:$0x1] %vm736, %v735
    %s739 = scalar_lea.vmem %s0, 49
    %v740 = vld [vmem:[%s739] sm:$0x1]
    %741 = vrot.lane.b32.xlu0 %v740, 19
    %v742 = vpop.permute.xlu0 %741
    %vm743 = vcmask 179352
    %s744 = scalar_lea.vmem [#allocation0], 8
    %745 = vst.msk [vmem:[%s744] sm:$0x1] %vm743, %v742
    %s746 = scalar_lea.vmem %s0, 6
    %v747 = vld [vmem:[%s746] sm:$0x1]
    %748 = vrot.lane.b32.xlu0 %v747, 18
    %v749 = vpop.permute.xlu0 %748
    %vm750 = vcmask 171152
    %751 = vst.msk [vmem:[#allocation0] sm:$0x1] %vm750, %v749
    %s752 = scalar_lea.vmem %s0, 91
    %v753 = vld [vmem:[%s752] sm:$0x1]
    %754 = vrot.lane.b32.xlu0 %v753, 17
    %v755 = vpop.permute.xlu0 %754
    %vm756 = vcmask 162952
    %s757 = scalar_lea.vmem [#allocation0], 16
    %758 = vst.msk [vmem:[%s757] sm:$0x1] %vm756, %v755
    %s759 = scalar_lea.vmem %s0, 48
    %v760 = vld [vmem:[%s759] sm:$0x1]
    %761 = vrot.lane.b32.xlu0 %v760, 16
    %v762 = vpop.permute.xlu0 %761
    %vm763 = vcmask 154752
    %s764 = scalar_lea.vmem [#allocation0], 8
    %765 = vst.msk [vmem:[%s764] sm:$0x1] %vm763, %v762
    %s766 = scalar_lea.vmem %s0, 5
    %v767 = vld [vmem:[%s766] sm:$0x1]
    %768 = vrot.lane.b32.xlu0 %v767, 15
    %v769 = vpop.permute.xlu0 %768
    %vm770 = vcmask 146552
    %771 = vst.msk [vmem:[#allocation0] sm:$0x1] %vm770, %v769
    %s772 = scalar_lea.vmem %s0, 90
    %v773 = vld [vmem:[%s772] sm:$0x1]
    %774 = vrot.lane.b32.xlu0 %v773, 14
    %v775 = vpop.permute.xlu0 %774
    %vm776 = vcmask 138352
    %s777 = scalar_lea.vmem [#allocation0], 16
    %778 = vst.msk [vmem:[%s777] sm:$0x1] %vm776, %v775
    %s779 = scalar_lea.vmem %s0, 47
    %v780 = vld [vmem:[%s779] sm:$0x1]
    %781 = vrot.lane.b32.xlu0 %v780, 13
    %v782 = vpop.permute.xlu0 %781
    %vm783 = vcmask 130152
    %s784 = scalar_lea.vmem [#allocation0], 8
    %785 = vst.msk [vmem:[%s784] sm:$0x1] %vm783, %v782
    %s786 = scalar_lea.vmem %s0, 4
    %v787 = vld [vmem:[%s786] sm:$0x1]
    %788 = vrot.lane.b32.xlu0 %v787, 12
    %v789 = vpop.permute.xlu0 %788
    %vm790 = vcmask 121952
    %791 = vst.msk [vmem:[#allocation0] sm:$0x1] %vm790, %v789
    %s792 = scalar_lea.vmem %s0, 89
    %v793 = vld [vmem:[%s792] sm:$0x1]
    %794 = vrot.lane.b32.xlu0 %v793, 11
    %v795 = vpop.permute.xlu0 %794
    %vm796 = vcmask 113752
    %s797 = scalar_lea.vmem [#allocation0], 16
    %798 = vst.msk [vmem:[%s797] sm:$0x1] %vm796, %v795
    %s799 = scalar_lea.vmem %s0, 46
    %v800 = vld [vmem:[%s799] sm:$0x1]
    %801 = vrot.lane.b32.xlu0 %v800, 10
    %v802 = vpop.permute.xlu0 %801
    %vm803 = vcmask 105552
    %s804 = scalar_lea.vmem [#allocation0], 8
    %805 = vst.msk [vmem:[%s804] sm:$0x1] %vm803, %v802
    %s806 = scalar_lea.vmem %s0, 3
    %v807 = vld [vmem:[%s806] sm:$0x1]
    %808 = vrot.lane.b32.xlu0 %v807, 9
    %v809 = vpop.permute.xlu0 %808
    %vm810 = vcmask 97352
    %811 = vst.msk [vmem:[#allocation0] sm:$0x1] %vm810, %v809
    %s812 = scalar_lea.vmem %s0, 88
    %v813 = vld [vmem:[%s812] sm:$0x1]
    %814 = vrot.lane.b32.xlu0 %v813, 8
    %v815 = vpop.permute.xlu0 %814
    %vm816 = vcmask 89152
    %s817 = scalar_lea.vmem [#allocation0], 16
    %818 = vst.msk [vmem:[%s817] sm:$0x1] %vm816, %v815
    %s819 = scalar_lea.vmem %s0, 45
    %v820 = vld [vmem:[%s819] sm:$0x1]
    %821 = vrot.lane.b32.xlu0 %v820, 7
    %v822 = vpop.permute.xlu0 %821
    %vm823 = vcmask 80952
    %s824 = scalar_lea.vmem [#allocation0], 8
    %825 = vst.msk [vmem:[%s824] sm:$0x1] %vm823, %v822
    %s826 = scalar_lea.vmem %s0, 2
    %v827 = vld [vmem:[%s826] sm:$0x1]
    %828 = vrot.lane.b32.xlu0 %v827, 6
    %v829 = vpop.permute.xlu0 %828
    %vm830 = vcmask 72752
    %831 = vst.msk [vmem:[#allocation0] sm:$0x1] %vm830, %v829
    %s832 = scalar_lea.vmem %s0, 87
    %v833 = vld [vmem:[%s832] sm:$0x1]
    %834 = vrot.lane.b32.xlu0 %v833, 5
    %v835 = vpop.permute.xlu0 %834
    %vm836 = vcmask 64552
    %s837 = scalar_lea.vmem [#allocation0], 16
    %838 = vst.msk [vmem:[%s837] sm:$0x1] %vm836, %v835
    %s839 = scalar_lea.vmem %s0, 44
    %v840 = vld [vmem:[%s839] sm:$0x1]
    %841 = vrot.lane.b32.xlu0 %v840, 4
    %v842 = vpop.permute.xlu0 %841
    %vm843 = vcmask 56352
    %s844 = scalar_lea.vmem [#allocation0], 8
    %845 = vst.msk [vmem:[%s844] sm:$0x1] %vm843, %v842
    %s846 = scalar_lea.vmem %s0, 1
    %v847 = vld [vmem:[%s846] sm:$0x1]
    %848 = vrot.lane.b32.xlu0 %v847, 3
    %v849 = vpop.permute.xlu0 %848
    %vm850 = vcmask 48152
    %851 = vst.msk [vmem:[#allocation0] sm:$0x1] %vm850, %v849
    %s852 = scalar_lea.vmem %s0, 86
    %v853 = vld [vmem:[%s852] sm:$0x1]
    %854 = vrot.lane.b32.xlu0 %v853, 2
    %v855 = vpop.permute.xlu0 %854
    %vm856 = vcmask 39952
    %s857 = scalar_lea.vmem [#allocation0], 16
    %858 = vst.msk [vmem:[%s857] sm:$0x1] %vm856, %v855
    %s859 = scalar_lea.vmem %s0, 43
    %v860 = vld [vmem:[%s859] sm:$0x1]
    %861 = vrot.lane.b32.xlu0 %v860, 1
    %v862 = vpop.permute.xlu0 %861
    %vm863 = vcmask 31752
    %s864 = scalar_lea.vmem [#allocation0], 8
    %865 = vst.msk [vmem:[%s864] sm:$0x1] %vm863, %v862
    %s867 = sshll.u32 1, 1
    %s868 = ssub.s32 %s867, 1
    %v870 = vld [vmem:[#allocation0] sm:%s868]
    %s871 = sshll.u32 1, 1
    %s872 = ssub.s32 %s871, 1
    %873 = vst [vmem:[%s1] sm:%s872] %v870
    %s874 = scalar_lea.vmem [#allocation0], 8
    %v875 = vld [vmem:[%s874] sm:%s868]
    %s876 = sshll.u32 1, 1
    %s877 = ssub.s32 %s876, 1
    %s878 = scalar_lea.vmem %s1, 1
    %879 = vst [vmem:[%s878] sm:%s877] %v875
    %s880 = scalar_lea.vmem [#allocation0], 16
    %v881 = vld [vmem:[%s880] sm:%s868]
    %s882 = sshll.u32 1, 1
    %s883 = ssub.s32 %s882, 1
    %s884 = smul.addr 1, 2
    %s885 = scalar_lea.vmem %s1, %s884
    %886 = vst [vmem:[%s885] sm:%s883] %v881

// kernel: sdf_surface_forward.1
$region0: #{sdf_surface_forward.1}
  #allocation0 [shape = 'u32[]', space=smem, size = 0x4, offset = 0x4, fixed_abs, tag = 'smem constant byte address 0x4 - core index']
  #allocation1 [shape = 'u32[144,128]{1,0:T(1,128)}', space=vmem, size = 0x12000, scoped, tag = 'internal scratch']
  #allocation2 [shape = 'f32[1]{0:T(128)S(6)}', space=smem, size = 0x200, scoped, tag = 'scoped memory for sdf_surface_forward.1']
  %s0 = inlined_call_operand.<no memory space> [shape: f32[1], index: 0, kind: input, shape index: {}]
  %s1 = inlined_call_operand.vmem [shape: f32[1,384], index: 1, kind: input, shape index: {}]
  %s2 = inlined_call_operand.vmem [shape: bf16[384,384], index: 2, kind: input, shape index: {}]
  %s3 = inlined_call_operand.vmem [shape: f32[8,384], index: 3, kind: input, shape index: {}]
  %s4 = inlined_call_operand.hbm [shape: f32[8,128], index: 4, kind: output, shape index: {}]
  %s5 = sld [smem:[#allocation0]]
  $region26: #{sdf_surface_forward.1} parent=0
    _
  %s7 = ssub.s32 1, %s5
  %s8 = scalar_select 0, %s7, %s5
  %9 = sst [smem:[#allocation2]] %s0
  $region1: #{sdf_surface_forward.1} parent=0
    #allocation3 [shape = 'u8[4096]{0}', space=vmem, size = 0x1000, scoped, tag = 'output window, operand 0, single buffered']
    #allocation4 [shape = 's32[1]{0}', space=sflag, size = 0x4, scoped, tag = 'scoped memory for sdf_surface_forward.1']
    %10 = vsyncpa [#allocation4], 0
    // Predicated region
    $region2: #{sdf_surface_forward.1} parent=1 // pred_check
      _
    $region3: #{sdf_surface_forward.1} parent=1 // pred_check_branch
      %12 = sbr.rel (0) target = $region5
    $region4: #{sdf_surface_forward.1} parent=1 // pred_region
      _
    $region5: #{sdf_surface_forward.1} parent=1 // pred_fallthru
      _
    // Predicated region
    $region6: #{sdf_surface_forward.1} parent=1 // pred_check
      _
    $region7: #{sdf_surface_forward.1} parent=1 // pred_check_branch
      %14 = sbr.rel (0) target = $region9
    $region8: #{sdf_surface_forward.1} parent=1 // pred_region
      _
    $region9: #{sdf_surface_forward.1} parent=1 // pred_fallthru
      _
    // Predicated region
    $region10: #{sdf_surface_forward.1} parent=1 // pred_check
      _
    $region11: #{sdf_surface_forward.1} parent=1 // pred_check_branch
      %16 = sbr.rel (0) target = $region13
    $region12: #{sdf_surface_forward.1} parent=1 // pred_region
      _
    $region13: #{sdf_surface_forward.1} parent=1 // pred_fallthru
      _
    // Predicated region
    $region14: #{sdf_surface_forward.1} parent=1 // pred_check
      _
    $region15: #{sdf_surface_forward.1} parent=1 // pred_check_branch
      %18 = sbr.rel (0) target = $region17
    $region16: #{sdf_surface_forward.1} parent=1 // pred_region
      _
    $region17: #{sdf_surface_forward.1} parent=1 // pred_fallthru
      _
    %v20 = vld [vmem:[%s3] sm:$0xff]
    %v21 = vld [vmem:[%s3 + $0x8] sm:$0xff]
    %v22 = vld [vmem:[%s3 + $0x10] sm:$0xff]
    %v23 = vld [vmem:[%s1] sm:$0x7]
    %v25 = vlaneseq
    %v26 = vshrl.u32 %v25, 7
    %v27 = vsub.s32 0, %v26
    %v28 = vrot.slane %v23, %v27
    %v29 = vlaneseq
    %v30 = vshrl.u32 %v29, 7
    %v31 = vsub.s32 1, %v30
    %v32 = vrot.slane %v23, %v31
    %v33 = vlaneseq
    %v34 = vshrl.u32 %v33, 7
    %v35 = vsub.s32 2, %v34
    %v36 = vrot.slane %v23, %v35
    %v40 = vsub.f32 %v20, %v28
    %v41 = vsub.f32 %v21, %v32
    %v42 = vsub.f32 %v22, %v36
    %v43 = vpack.c.bf16 %v40, %v40
    %v44 = vpack.c.bf16 %v41, %v41
    %v45 = vpack.c.bf16 %v42, %v42
    %v46 = vunpack.c.l.bf16 %v43
    %v47 = vunpack.c.l.bf16 %v44
    %v48 = vunpack.c.l.bf16 %v45
    %v49 = vsub.f32 %v40, %v46
    %v50 = vsub.f32 %v41, %v47
    %v51 = vsub.f32 %v42, %v48
    %v52 = vpack.c.bf16 %v49, %v49
    %v53 = vpack.c.bf16 %v50, %v50
    %v54 = vpack.c.bf16 %v51, %v51
    %v55 = vld [vmem:[%s2] sm:$0xff]
    %v56 = vld [vmem:[%s2 + $0x8] sm:$0xf]
    %v57 = vld [vmem:[%s2 + $0xc] sm:$0xff]
    %v58 = vld [vmem:[%s2 + $0x14] sm:$0xf]
    %v59 = vld [vmem:[%s2 + $0x18] sm:$0xff]
    %v60 = vld [vmem:[%s2 + $0x20] sm:$0xf]
    %v61 = vld [vmem:[%s2 + $0x24] sm:$0xff]
    %v62 = vld [vmem:[%s2 + $0x2c] sm:$0xf]
    %v63 = vld [vmem:[%s2 + $0x30] sm:$0xff]
    %v64 = vld [vmem:[%s2 + $0x38] sm:$0xf]
    %v65 = vld [vmem:[%s2 + $0x3c] sm:$0xff]
    %v66 = vld [vmem:[%s2 + $0x44] sm:$0xf]
    %v67 = vld [vmem:[%s2 + $0x48] sm:$0xff]
    %v68 = vld [vmem:[%s2 + $0x50] sm:$0xf]
    %v69 = vld [vmem:[%s2 + $0x54] sm:$0xff]
    %v70 = vld [vmem:[%s2 + $0x5c] sm:$0xf]
    %v71 = vld [vmem:[%s2 + $0x60] sm:$0xff]
    %v72 = vld [vmem:[%s2 + $0x68] sm:$0xf]
    %v73 = vld [vmem:[%s2 + $0x6c] sm:$0xff]
    %v74 = vld [vmem:[%s2 + $0x74] sm:$0xf]
    %v75 = vld [vmem:[%s2 + $0x78] sm:$0xff]
    %v76 = vld [vmem:[%s2 + $0x80] sm:$0xf]
    %v77 = vld [vmem:[%s2 + $0x84] sm:$0xff]
    %v78 = vld [vmem:[%s2 + $0x8c] sm:$0xf]
    %v79 = vld [vmem:[%s2 + $0x90] sm:$0xff]
    %v80 = vld [vmem:[%s2 + $0x98] sm:$0xf]
    %v81 = vld [vmem:[%s2 + $0x9c] sm:$0xff]
    %v82 = vld [vmem:[%s2 + $0xa4] sm:$0xf]
    %v83 = vld [vmem:[%s2 + $0xa8] sm:$0xff]
    %v84 = vld [vmem:[%s2 + $0xb0] sm:$0xf]
    %v85 = vld [vmem:[%s2 + $0xb4] sm:$0xff]
    %v86 = vld [vmem:[%s2 + $0xbc] sm:$0xf]
    %v87 = vld [vmem:[%s2 + $0xc0] sm:$0xff]
    %v88 = vld [vmem:[%s2 + $0xc8] sm:$0xf]
    %v89 = vld [vmem:[%s2 + $0xcc] sm:$0xff]
    %v90 = vld [vmem:[%s2 + $0xd4] sm:$0xf]
    %v91 = vld [vmem:[%s2 + $0xd8] sm:$0xff]
    %v92 = vld [vmem:[%s2 + $0xe0] sm:$0xf]
    %v93 = vld [vmem:[%s2 + $0xe4] sm:$0xff]
    %v94 = vld [vmem:[%s2 + $0xec] sm:$0xf]
    %v95 = vld [vmem:[%s2 + $0xf0] sm:$0xff]
    %v96 = vld [vmem:[%s2 + $0xf8] sm:$0xf]
    %v97 = vld [vmem:[%s2 + $0xfc] sm:$0xff]
    %v98 = vld [vmem:[%s2 + $0x104] sm:$0xf]
    %v99 = vld [vmem:[%s2 + $0x108] sm:$0xff]
    %v100 = vld [vmem:[%s2 + $0x110] sm:$0xf]
    %v101 = vld [vmem:[%s2 + $0x114] sm:$0xff]
    %v102 = vld [vmem:[%s2 + $0x11c] sm:$0xf]
    %v103 = vld [vmem:[%s2 + $0x120] sm:$0xff]
    %v104 = vld [vmem:[%s2 + $0x128] sm:$0xf]
    %v105 = vld [vmem:[%s2 + $0x12c] sm:$0xff]
    %v106 = vld [vmem:[%s2 + $0x134] sm:$0xf]
    %v107 = vld [vmem:[%s2 + $0x138] sm:$0xff]
    %v108 = vld [vmem:[%s2 + $0x140] sm:$0xf]
    %v109 = vld [vmem:[%s2 + $0x144] sm:$0xff]
    %v110 = vld [vmem:[%s2 + $0x14c] sm:$0xf]
    %v111 = vld [vmem:[%s2 + $0x150] sm:$0xff]
    %v112 = vld [vmem:[%s2 + $0x158] sm:$0xf]
    %v113 = vld [vmem:[%s2 + $0x15c] sm:$0xff]
    %v114 = vld [vmem:[%s2 + $0x164] sm:$0xf]
    %v115 = vld [vmem:[%s2 + $0x168] sm:$0xff]
    %v116 = vld [vmem:[%s2 + $0x170] sm:$0xf]
    %v117 = vld [vmem:[%s2 + $0x174] sm:$0xff]
    %v118 = vld [vmem:[%s2 + $0x17c] sm:$0xf]
    %v119 = vld [vmem:[%s2 + $0x180] sm:$0xff]
    %v120 = vld [vmem:[%s2 + $0x188] sm:$0xf]
    %v121 = vld [vmem:[%s2 + $0x18c] sm:$0xff]
    %v122 = vld [vmem:[%s2 + $0x194] sm:$0xf]
    %v123 = vld [vmem:[%s2 + $0x198] sm:$0xff]
    %v124 = vld [vmem:[%s2 + $0x1a0] sm:$0xf]
    %v125 = vld [vmem:[%s2 + $0x1a4] sm:$0xff]
    %v126 = vld [vmem:[%s2 + $0x1ac] sm:$0xf]
    %v127 = vld [vmem:[%s2 + $0x1b0] sm:$0xff]
    %v128 = vld [vmem:[%s2 + $0x1b8] sm:$0xf]
    %v129 = vld [vmem:[%s2 + $0x1bc] sm:$0xff]
    %v130 = vld [vmem:[%s2 + $0x1c4] sm:$0xf]
    %v131 = vld [vmem:[%s2 + $0x1c8] sm:$0xff]
    %v132 = vld [vmem:[%s2 + $0x1d0] sm:$0xf]
    %v133 = vld [vmem:[%s2 + $0x1d4] sm:$0xff]
    %v134 = vld [vmem:[%s2 + $0x1dc] sm:$0xf]
    %v135 = vld [vmem:[%s2 + $0x1e0] sm:$0xff]
    %v136 = vld [vmem:[%s2 + $0x1e8] sm:$0xf]
    %v137 = vld [vmem:[%s2 + $0x1ec] sm:$0xff]
    %v138 = vld [vmem:[%s2 + $0x1f4] sm:$0xf]
    %v139 = vld [vmem:[%s2 + $0x1f8] sm:$0xff]
    %v140 = vld [vmem:[%s2 + $0x200] sm:$0xf]
    %v141 = vld [vmem:[%s2 + $0x204] sm:$0xff]
    %v142 = vld [vmem:[%s2 + $0x20c] sm:$0xf]
    %v143 = vld [vmem:[%s2 + $0x210] sm:$0xff]
    %v144 = vld [vmem:[%s2 + $0x218] sm:$0xf]
    %v145 = vld [vmem:[%s2 + $0x21c] sm:$0xff]
    %v146 = vld [vmem:[%s2 + $0x224] sm:$0xf]
    %v147 = vld [vmem:[%s2 + $0x228] sm:$0xff]
    %v148 = vld [vmem:[%s2 + $0x230] sm:$0xf]
    %v149 = vld [vmem:[%s2 + $0x234] sm:$0xff]
    %v150 = vld [vmem:[%s2 + $0x23c] sm:$0xf]
    %v247 = vunpack.c.l.b16 %v55
    %v248 = vunpack.c.h.b16 %v55
    %v249 = vunpack.c.l.b16 %v56
    %v250 = vunpack.c.l.b16 %v57
    %v251 = vunpack.c.h.b16 %v57
    %v252 = vunpack.c.l.b16 %v58
    %v253 = vunpack.c.l.b16 %v59
    %v254 = vunpack.c.h.b16 %v59
    %v255 = vunpack.c.l.b16 %v60
    %v256 = vunpack.c.l.b16 %v61
    %v257 = vunpack.c.h.b16 %v61
    %v258 = vunpack.c.l.b16 %v62
    %v259 = vunpack.c.l.b16 %v63
    %v260 = vunpack.c.h.b16 %v63
    %v261 = vunpack.c.l.b16 %v64
    %v262 = vunpack.c.l.b16 %v65
    %v263 = vunpack.c.h.b16 %v65
    %v264 = vunpack.c.l.b16 %v66
    %v265 = vunpack.c.l.b16 %v67
    %v266 = vunpack.c.h.b16 %v67
    %v267 = vunpack.c.l.b16 %v68
    %v268 = vunpack.c.l.b16 %v69
    %v269 = vunpack.c.h.b16 %v69
    %v270 = vunpack.c.l.b16 %v70
    %v271 = vunpack.c.l.b16 %v71
    %v272 = vunpack.c.h.b16 %v71
    %v273 = vunpack.c.l.b16 %v72
    %v274 = vunpack.c.l.b16 %v73
    %v275 = vunpack.c.h.b16 %v73
    %v276 = vunpack.c.l.b16 %v74
    %v277 = vunpack.c.l.b16 %v75
    %v278 = vunpack.c.h.b16 %v75
    %v279 = vunpack.c.l.b16 %v76
    %v280 = vunpack.c.l.b16 %v77
    %v281 = vunpack.c.h.b16 %v77
    %v282 = vunpack.c.l.b16 %v78
    %v283 = vunpack.c.l.b16 %v79
    %v284 = vunpack.c.h.b16 %v79
    %v285 = vunpack.c.l.b16 %v80
    %v286 = vunpack.c.l.b16 %v81
    %v287 = vunpack.c.h.b16 %v81
    %v288 = vunpack.c.l.b16 %v82
    %v289 = vunpack.c.l.b16 %v83
    %v290 = vunpack.c.h.b16 %v83
    %v291 = vunpack.c.l.b16 %v84
    %v292 = vunpack.c.l.b16 %v85
    %v293 = vunpack.c.h.b16 %v85
    %v294 = vunpack.c.l.b16 %v86
    %v295 = vunpack.c.l.b16 %v87
    %v296 = vunpack.c.h.b16 %v87
    %v297 = vunpack.c.l.b16 %v88
    %v298 = vunpack.c.l.b16 %v89
    %v299 = vunpack.c.h.b16 %v89
    %v300 = vunpack.c.l.b16 %v90
    %v301 = vunpack.c.l.b16 %v91
    %v302 = vunpack.c.h.b16 %v91
    %v303 = vunpack.c.l.b16 %v92
    %v304 = vunpack.c.l.b16 %v93
    %v305 = vunpack.c.h.b16 %v93
    %v306 = vunpack.c.l.b16 %v94
    %v307 = vunpack.c.l.b16 %v95
    %v308 = vunpack.c.h.b16 %v95
    %v309 = vunpack.c.l.b16 %v96
    %v310 = vunpack.c.l.b16 %v97
    %v311 = vunpack.c.h.b16 %v97
    %v312 = vunpack.c.l.b16 %v98
    %v313 = vunpack.c.l.b16 %v99
    %v314 = vunpack.c.h.b16 %v99
    %v315 = vunpack.c.l.b16 %v100
    %v316 = vunpack.c.l.b16 %v101
    %v317 = vunpack.c.h.b16 %v101
    %v318 = vunpack.c.l.b16 %v102
    %v319 = vunpack.c.l.b16 %v103
    %v320 = vunpack.c.h.b16 %v103
    %v321 = vunpack.c.l.b16 %v104
    %v322 = vunpack.c.l.b16 %v105
    %v323 = vunpack.c.h.b16 %v105
    %v324 = vunpack.c.l.b16 %v106
    %v325 = vunpack.c.l.b16 %v107
    %v326 = vunpack.c.h.b16 %v107
    %v327 = vunpack.c.l.b16 %v108
    %v328 = vunpack.c.l.b16 %v109
    %v329 = vunpack.c.h.b16 %v109
    %v330 = vunpack.c.l.b16 %v110
    %v331 = vunpack.c.l.b16 %v111
    %v332 = vunpack.c.h.b16 %v111
    %v333 = vunpack.c.l.b16 %v112
    %v334 = vunpack.c.l.b16 %v113
    %v335 = vunpack.c.h.b16 %v113
    %v336 = vunpack.c.l.b16 %v114
    %v337 = vunpack.c.l.b16 %v115
    %v338 = vunpack.c.h.b16 %v115
    %v339 = vunpack.c.l.b16 %v116
    %v340 = vunpack.c.l.b16 %v117
    %v341 = vunpack.c.h.b16 %v117
    %v342 = vunpack.c.l.b16 %v118
    %v343 = vunpack.c.l.b16 %v119
    %v344 = vunpack.c.h.b16 %v119
    %v345 = vunpack.c.l.b16 %v120
    %v346 = vunpack.c.l.b16 %v121
    %v347 = vunpack.c.h.b16 %v121
    %v348 = vunpack.c.l.b16 %v122
    %v349 = vunpack.c.l.b16 %v123
    %v350 = vunpack.c.h.b16 %v123
    %v351 = vunpack.c.l.b16 %v124
    %v352 = vunpack.c.l.b16 %v125
    %v353 = vunpack.c.h.b16 %v125
    %v354 = vunpack.c.l.b16 %v126
    %v355 = vunpack.c.l.b16 %v127
    %v356 = vunpack.c.h.b16 %v127
    %v357 = vunpack.c.l.b16 %v128
    %v358 = vunpack.c.l.b16 %v129
    %v359 = vunpack.c.h.b16 %v129
    %v360 = vunpack.c.l.b16 %v130
    %v361 = vunpack.c.l.b16 %v131
    %v362 = vunpack.c.h.b16 %v131
    %v363 = vunpack.c.l.b16 %v132
    %v364 = vunpack.c.l.b16 %v133
    %v365 = vunpack.c.h.b16 %v133
    %v366 = vunpack.c.l.b16 %v134
    %v367 = vunpack.c.l.b16 %v135
    %v368 = vunpack.c.h.b16 %v135
    %v369 = vunpack.c.l.b16 %v136
    %v370 = vunpack.c.l.b16 %v137
    %v371 = vunpack.c.h.b16 %v137
    %v372 = vunpack.c.l.b16 %v138
    %v373 = vunpack.c.l.b16 %v139
    %v374 = vunpack.c.h.b16 %v139
    %v375 = vunpack.c.l.b16 %v140
    %v376 = vunpack.c.l.b16 %v141
    %v377 = vunpack.c.h.b16 %v141
    %v378 = vunpack.c.l.b16 %v142
    %v379 = vunpack.c.l.b16 %v143
    %v380 = vunpack.c.h.b16 %v143
    %v381 = vunpack.c.l.b16 %v144
    %v382 = vunpack.c.l.b16 %v145
    %v383 = vunpack.c.h.b16 %v145
    %v384 = vunpack.c.l.b16 %v146
    %v385 = vunpack.c.l.b16 %v147
    %v386 = vunpack.c.h.b16 %v147
    %v387 = vunpack.c.l.b16 %v148
    %v388 = vunpack.c.l.b16 %v149
    %v389 = vunpack.c.h.b16 %v149
    %v390 = vunpack.c.l.b16 %v150
    %v391 = vpack.c.b16 %v250, %v247
    %v392 = vpack.c.b16 %v251, %v248
    %v393 = vpack.c.b16 %v252, %v249
    %v394 = vpack.c.b16 %v256, %v253
    %v395 = vpack.c.b16 %v257, %v254
    %v396 = vpack.c.b16 %v258, %v255
    %v397 = vpack.c.b16 %v262, %v259
    %v398 = vpack.c.b16 %v263, %v260
    %v399 = vpack.c.b16 %v264, %v261
    %v400 = vpack.c.b16 %v268, %v265
    %v401 = vpack.c.b16 %v269, %v266
    %v402 = vpack.c.b16 %v270, %v267
    %v403 = vpack.c.b16 %v274, %v271
    %v404 = vpack.c.b16 %v275, %v272
    %v405 = vpack.c.b16 %v276, %v273
    %v406 = vpack.c.b16 %v280, %v277
    %v407 = vpack.c.b16 %v281, %v278
    %v408 = vpack.c.b16 %v282, %v279
    %v409 = vpack.c.b16 %v286, %v283
    %v410 = vpack.c.b16 %v287, %v284
    %v411 = vpack.c.b16 %v288, %v285
    %v412 = vpack.c.b16 %v292, %v289
    %v413 = vpack.c.b16 %v293, %v290
    %v414 = vpack.c.b16 %v294, %v291
    %v415 = vpack.c.b16 %v298, %v295
    %v416 = vpack.c.b16 %v299, %v296
    %v417 = vpack.c.b16 %v300, %v297
    %v418 = vpack.c.b16 %v304, %v301
    %v419 = vpack.c.b16 %v305, %v302
    %v420 = vpack.c.b16 %v306, %v303
    %v421 = vpack.c.b16 %v310, %v307
    %v422 = vpack.c.b16 %v311, %v308
    %v423 = vpack.c.b16 %v312, %v309
    %v424 = vpack.c.b16 %v316, %v313
    %v425 = vpack.c.b16 %v317, %v314
    %v426 = vpack.c.b16 %v318, %v315
    %v427 = vpack.c.b16 %v322, %v319
    %v428 = vpack.c.b16 %v323, %v320
    %v429 = vpack.c.b16 %v324, %v321
    %v430 = vpack.c.b16 %v328, %v325
    %v431 = vpack.c.b16 %v329, %v326
    %v432 = vpack.c.b16 %v330, %v327
    %v433 = vpack.c.b16 %v334, %v331
    %v434 = vpack.c.b16 %v335, %v332
    %v435 = vpack.c.b16 %v336, %v333
    %v436 = vpack.c.b16 %v340, %v337
    %v437 = vpack.c.b16 %v341, %v338
    %v438 = vpack.c.b16 %v342, %v339
    %v439 = vpack.c.b16 %v346, %v343
    %v440 = vpack.c.b16 %v347, %v344
    %v441 = vpack.c.b16 %v348, %v345
    %v442 = vpack.c.b16 %v352, %v349
    %v443 = vpack.c.b16 %v353, %v350
    %v444 = vpack.c.b16 %v354, %v351
    %v445 = vpack.c.b16 %v358, %v355
    %v446 = vpack.c.b16 %v359, %v356
    %v447 = vpack.c.b16 %v360, %v357
    %v448 = vpack.c.b16 %v364, %v361
    %v449 = vpack.c.b16 %v365, %v362
    %v450 = vpack.c.b16 %v366, %v363
    %v451 = vpack.c.b16 %v370, %v367
    %v452 = vpack.c.b16 %v371, %v368
    %v453 = vpack.c.b16 %v372, %v369
    %v454 = vpack.c.b16 %v376, %v373
    %v455 = vpack.c.b16 %v377, %v374
    %v456 = vpack.c.b16 %v378, %v375
    %v457 = vpack.c.b16 %v382, %v379
    %v458 = vpack.c.b16 %v383, %v380
    %v459 = vpack.c.b16 %v384, %v381
    %v460 = vpack.c.b16 %v388, %v385
    %v461 = vpack.c.b16 %v389, %v386
    %v462 = vpack.c.b16 %v390, %v387
    %535 = vmatprep.subr.bf16.mxu0 %v413
    %536 = vmatpush1.bf16.msra.mxu0 %v412
    %537 = vmatprep.subr.bf16.mxu0 %v410
    %538 = vmatpush1.bf16.msra.mxu0 %v409
    %539 = vmatprep.subr.bf16.mxu0 %v407
    %540 = vmatpush1.bf16.msra.mxu0 %v406
    %541 = vmatprep.subr.bf16.mxu0 %v404
    %542 = vmatpush1.bf16.msra.mxu0 %v403
    %543 = vmatprep.subr.bf16.mxu0 %v401
    %544 = vmatpush1.bf16.msra.mxu0 %v400
    %545 = vmatprep.subr.bf16.mxu0 %v398
    %546 = vmatpush1.bf16.msra.mxu0 %v397
    %547 = vmatprep.subr.bf16.mxu0 %v395
    %548 = vmatpush1.bf16.msra.mxu0 %v394
    %549 = vmatprep.subr.bf16.mxu0 %v392
    %550 = vmatpush1.bf16.msra.mxu0 %v391
    %551 = vmatprep.subr.bf16.mxu0 %v437
    %552 = vmatpush2.bf16.msra.mxu0 %v436
    %553 = vmatprep.subr.bf16.mxu0 %v434
    %554 = vmatpush2.bf16.msra.mxu0 %v433
    %555 = vmatprep.subr.bf16.mxu0 %v431
    %556 = vmatpush2.bf16.msra.mxu0 %v430
    %557 = vmatprep.subr.bf16.mxu0 %v428
    %558 = vmatpush2.bf16.msra.mxu0 %v427
    %559 = vmatprep.subr.bf16.mxu0 %v425
    %560 = vmatpush2.bf16.msra.mxu0 %v424
    %561 = vmatprep.subr.bf16.mxu0 %v422
    %562 = vmatpush2.bf16.msra.mxu0 %v421
    %563 = vmatprep.subr.bf16.mxu0 %v419
    %564 = vmatpush2.bf16.msra.mxu0 %v418
    %565 = vmatprep.subr.bf16.mxu0 %v416
    %566 = vmatpush2.bf16.msra.mxu0 %v415
    %567 = vmatprep.mubr.bf16.mxu0 %v53
    %568 = vmatmul.mubr.bf16.gmra.mxu0 %v52
    %v569 = vpop.f32.mrf.mxu0
    %v570 = vadd.f32 0.0, %v569
    %v571 = vpop.f32.mrf.mxu0
    %v572 = vadd.f32 0.0, %v571
    %v573 = vpop.f32.mrf.mxu0
    %v574 = vpop.f32.mrf.mxu0
    %575 = vdwg.mxu0
    %576 = vmatprep.subr.bf16.mxu0 %v461
    %577 = vmatpush1.bf16.msra.mxu0 %v460
    %578 = vmatprep.subr.bf16.mxu0 %v458
    %579 = vmatpush1.bf16.msra.mxu0 %v457
    %580 = vmatprep.subr.bf16.mxu0 %v455
    %581 = vmatpush1.bf16.msra.mxu0 %v454
    %582 = vmatprep.subr.bf16.mxu0 %v452
    %583 = vmatpush1.bf16.msra.mxu0 %v451
    %584 = vmatprep.subr.bf16.mxu0 %v449
    %585 = vmatpush1.bf16.msra.mxu0 %v448
    %586 = vmatprep.subr.bf16.mxu0 %v446
    %587 = vmatpush1.bf16.msra.mxu0 %v445
    %588 = vmatprep.subr.bf16.mxu0 %v443
    %589 = vmatpush1.bf16.msra.mxu0 %v442
    %590 = vmatprep.subr.bf16.mxu0 %v440
    %591 = vmatpush1.bf16.msra.mxu0 %v439
    %592 = vmatprep.subr.bf16.mxu0 0
    %593 = vmatpush2.bf16.msra.mxu0 0
    %594 = vmatprep.subr.bf16.mxu0 0
    %595 = vmatpush2.bf16.msra.mxu0 0
    %596 = vmatprep.subr.bf16.mxu0 0
    %597 = vmatpush2.bf16.msra.mxu0 0
    %598 = vmatprep.subr.bf16.mxu0 0
    %599 = vmatpush2.bf16.msra.mxu0 0
    %600 = vmatprep.subr.bf16.mxu0 0
    %601 = vmatpush2.bf16.msra.mxu0 0
    %602 = vmatprep.subr.bf16.mxu0 0
    %603 = vmatpush2.bf16.msra.mxu0 0
    %604 = vmatprep.subr.bf16.mxu0 0
    %605 = vmatpush2.bf16.msra.mxu0 0
    %606 = vmatprep.subr.bf16.mxu0 0
    %607 = vmatpush2.bf16.msra.mxu0 0
    %608 = vmatprep.mubr.bf16.mxu0 0
    %609 = vmatmul.mubr.bf16.gmra.mxu0 %v54
    %v610 = vpop.f32.mrf.mxu0
    %v611 = vadd.f32 %v570, %v610
    %v612 = vpop.f32.mrf.mxu0
    %v613 = vadd.f32 %v572, %v612
    %v614 = vpop.f32.mrf.mxu0
    %v615 = vpop.f32.mrf.mxu0
    %616 = vdwg.mxu0
    %617 = vmatprep.subr.bf16.mxu0 0
    %618 = vmatpush1.bf16.msra.mxu0 %v414
    %619 = vmatprep.subr.bf16.mxu0 0
    %620 = vmatpush1.bf16.msra.mxu0 %v411
    %621 = vmatprep.subr.bf16.mxu0 0
    %622 = vmatpush1.bf16.msra.mxu0 %v408
    %623 = vmatprep.subr.bf16.mxu0 0
    %624 = vmatpush1.bf16.msra.mxu0 %v405
    %625 = vmatprep.subr.bf16.mxu0 0
    %626 = vmatpush1.bf16.msra.mxu0 %v402
    %627 = vmatprep.subr.bf16.mxu0 0
    %628 = vmatpush1.bf16.msra.mxu0 %v399
    %629 = vmatprep.subr.bf16.mxu0 0
    %630 = vmatpush1.bf16.msra.mxu0 %v396
    %631 = vmatprep.subr.bf16.mxu0 0
    %632 = vmatpush1.bf16.msra.mxu0 %v393
    %633 = vmatprep.subr.bf16.mxu0 0
    %634 = vmatpush2.bf16.msra.mxu0 %v438
    %635 = vmatprep.subr.bf16.mxu0 0
    %636 = vmatpush2.bf16.msra.mxu0 %v435
    %637 = vmatprep.subr.bf16.mxu0 0
    %638 = vmatpush2.bf16.msra.mxu0 %v432
    %639 = vmatprep.subr.bf16.mxu0 0
    %640 = vmatpush2.bf16.msra.mxu0 %v429
    %641 = vmatprep.subr.bf16.mxu0 0
    %642 = vmatpush2.bf16.msra.mxu0 %v426
    %643 = vmatprep.subr.bf16.mxu0 0
    %644 = vmatpush2.bf16.msra.mxu0 %v423
    %645 = vmatprep.subr.bf16.mxu0 0
    %646 = vmatpush2.bf16.msra.mxu0 %v420
    %647 = vmatprep.subr.bf16.mxu0 0
    %648 = vmatpush2.bf16.msra.mxu0 %v417
    %649 = vmatprep.mubr.bf16.mxu0 %v53
    %650 = vmatmul.mubr.bf16.gmra.mxu0 %v52
    %v651 = vpop.f32.mrf.mxu0
    %v652 = vadd.f32 0.0, %v651
    %v653 = vpop.f32.mrf.mxu0
    %v654 = vpop.f32.mrf.mxu0
    %v655 = vpop.f32.mrf.mxu0
    %656 = vdwg.mxu0
    %657 = vmatprep.subr.bf16.mxu0 0
    %658 = vmatpush1.bf16.msra.mxu0 %v462
    %659 = vmatprep.subr.bf16.mxu0 0
    %660 = vmatpush1.bf16.msra.mxu0 %v459
    %661 = vmatprep.subr.bf16.mxu0 0
    %662 = vmatpush1.bf16.msra.mxu0 %v456
    %663 = vmatprep.subr.bf16.mxu0 0
    %664 = vmatpush1.bf16.msra.mxu0 %v453
    %665 = vmatprep.subr.bf16.mxu0 0
    %666 = vmatpush1.bf16.msra.mxu0 %v450
    %667 = vmatprep.subr.bf16.mxu0 0
    %668 = vmatpush1.bf16.msra.mxu0 %v447
    %669 = vmatprep.subr.bf16.mxu0 0
    %670 = vmatpush1.bf16.msra.mxu0 %v444
    %671 = vmatprep.subr.bf16.mxu0 0
    %672 = vmatpush1.bf16.msra.mxu0 %v441
    %673 = vmatprep.subr.bf16.mxu0 0
    %674 = vmatpush2.bf16.msra.mxu0 0
    %675 = vmatprep.subr.bf16.mxu0 0
    %676 = vmatpush2.bf16.msra.mxu0 0
    %677 = vmatprep.subr.bf16.mxu0 0
    %678 = vmatpush2.bf16.msra.mxu0 0
    %679 = vmatprep.subr.bf16.mxu0 0
    %680 = vmatpush2.bf16.msra.mxu0 0
    %681 = vmatprep.subr.bf16.mxu0 0
    %682 = vmatpush2.bf16.msra.mxu0 0
    %683 = vmatprep.subr.bf16.mxu0 0
    %684 = vmatpush2.bf16.msra.mxu0 0
    %685 = vmatprep.subr.bf16.mxu0 0
    %686 = vmatpush2.bf16.msra.mxu0 0
    %687 = vmatprep.subr.bf16.mxu0 0
    %688 = vmatpush2.bf16.msra.mxu0 0
    %689 = vmatprep.mubr.bf16.mxu0 0
    %690 = vmatmul.mubr.bf16.gmra.mxu0 %v54
    %v691 = vpop.f32.mrf.mxu0
    %v692 = vadd.f32 %v652, %v691
    %v693 = vpop.f32.mrf.mxu0
    %v694 = vpop.f32.mrf.mxu0
    %v695 = vpop.f32.mrf.mxu0
    %696 = vdwg.mxu0
    %697 = vmatprep.subr.bf16.mxu0 %v413
    %698 = vmatpush1.bf16.msra.mxu0 %v412
    %699 = vmatprep.subr.bf16.mxu0 %v410
    %700 = vmatpush1.bf16.msra.mxu0 %v409
    %701 = vmatprep.subr.bf16.mxu0 %v407
    %702 = vmatpush1.bf16.msra.mxu0 %v406
    %703 = vmatprep.subr.bf16.mxu0 %v404
    %704 = vmatpush1.bf16.msra.mxu0 %v403
    %705 = vmatprep.subr.bf16.mxu0 %v401
    %706 = vmatpush1.bf16.msra.mxu0 %v400
    %707 = vmatprep.subr.bf16.mxu0 %v398
    %708 = vmatpush1.bf16.msra.mxu0 %v397
    %709 = vmatprep.subr.bf16.mxu0 %v395
    %710 = vmatpush1.bf16.msra.mxu0 %v394
    %711 = vmatprep.subr.bf16.mxu0 %v392
    %712 = vmatpush1.bf16.msra.mxu0 %v391
    %713 = vmatprep.subr.bf16.mxu0 %v437
    %714 = vmatpush2.bf16.msra.mxu0 %v436
    %715 = vmatprep.subr.bf16.mxu0 %v434
    %716 = vmatpush2.bf16.msra.mxu0 %v433
    %717 = vmatprep.subr.bf16.mxu0 %v431
    %718 = vmatpush2.bf16.msra.mxu0 %v430
    %719 = vmatprep.subr.bf16.mxu0 %v428
    %720 = vmatpush2.bf16.msra.mxu0 %v427
    %721 = vmatprep.subr.bf16.mxu0 %v425
    %722 = vmatpush2.bf16.msra.mxu0 %v424
    %723 = vmatprep.subr.bf16.mxu0 %v422
    %724 = vmatpush2.bf16.msra.mxu0 %v421
    %725 = vmatprep.subr.bf16.mxu0 %v419
    %726 = vmatpush2.bf16.msra.mxu0 %v418
    %727 = vmatprep.subr.bf16.mxu0 %v416
    %728 = vmatpush2.bf16.msra.mxu0 %v415
    %729 = vmatprep.mubr.bf16.mxu0 %v44
    %730 = vmatmul.mubr.bf16.gmra.mxu0 %v43
    %v731 = vpop.f32.mrf.mxu0
    %v732 = vadd.f32 %v611, %v731
    %v733 = vpop.f32.mrf.mxu0
    %v734 = vadd.f32 %v613, %v733
    %v735 = vpop.f32.mrf.mxu0
    %v736 = vpop.f32.mrf.mxu0
    %737 = vdwg.mxu0
    %738 = vmatprep.subr.bf16.mxu0 %v461
    %739 = vmatpush1.bf16.msra.mxu0 %v460
    %740 = vmatprep.subr.bf16.mxu0 %v458
    %741 = vmatpush1.bf16.msra.mxu0 %v457
    %742 = vmatprep.subr.bf16.mxu0 %v455
    %743 = vmatpush1.bf16.msra.mxu0 %v454
    %744 = vmatprep.subr.bf16.mxu0 %v452
    %745 = vmatpush1.bf16.msra.mxu0 %v451
    %746 = vmatprep.subr.bf16.mxu0 %v449
    %747 = vmatpush1.bf16.msra.mxu0 %v448
    %748 = vmatprep.subr.bf16.mxu0 %v446
    %749 = vmatpush1.bf16.msra.mxu0 %v445
    %750 = vmatprep.subr.bf16.mxu0 %v443
    %751 = vmatpush1.bf16.msra.mxu0 %v442
    %752 = vmatprep.subr.bf16.mxu0 %v440
    %753 = vmatpush1.bf16.msra.mxu0 %v439
    %754 = vmatprep.subr.bf16.mxu0 0
    %755 = vmatpush2.bf16.msra.mxu0 0
    %756 = vmatprep.subr.bf16.mxu0 0
    %757 = vmatpush2.bf16.msra.mxu0 0
    %758 = vmatprep.subr.bf16.mxu0 0
    %759 = vmatpush2.bf16.msra.mxu0 0
    %760 = vmatprep.subr.bf16.mxu0 0
    %761 = vmatpush2.bf16.msra.mxu0 0
    %762 = vmatprep.subr.bf16.mxu0 0
    %763 = vmatpush2.bf16.msra.mxu0 0
    %764 = vmatprep.subr.bf16.mxu0 0
    %765 = vmatpush2.bf16.msra.mxu0 0
    %766 = vmatprep.subr.bf16.mxu0 0
    %767 = vmatpush2.bf16.msra.mxu0 0
    %768 = vmatprep.subr.bf16.mxu0 0
    %769 = vmatpush2.bf16.msra.mxu0 0
    %770 = vmatprep.mubr.bf16.mxu0 0
    %771 = vmatmul.mubr.bf16.gmra.mxu0 %v45
    %v772 = vpop.f32.mrf.mxu0
    %v773 = vadd.f32 %v732, %v772
    %v774 = vpop.f32.mrf.mxu0
    %v775 = vadd.f32 %v734, %v774
    %v776 = vpop.f32.mrf.mxu0
    %v777 = vpop.f32.mrf.mxu0
    %778 = vdwg.mxu0
    %779 = vmatprep.subr.bf16.mxu0 0
    %780 = vmatpush1.bf16.msra.mxu0 %v414
    %781 = vmatprep.subr.bf16.mxu0 0
    %782 = vmatpush1.bf16.msra.mxu0 %v411
    %783 = vmatprep.subr.bf16.mxu0 0
    %784 = vmatpush1.bf16.msra.mxu0 %v408
    %785 = vmatprep.subr.bf16.mxu0 0
    %786 = vmatpush1.bf16.msra.mxu0 %v405
    %787 = vmatprep.subr.bf16.mxu0 0
    %788 = vmatpush1.bf16.msra.mxu0 %v402
    %789 = vmatprep.subr.bf16.mxu0 0
    %790 = vmatpush1.bf16.msra.mxu0 %v399
    %791 = vmatprep.subr.bf16.mxu0 0
    %792 = vmatpush1.bf16.msra.mxu0 %v396
    %793 = vmatprep.subr.bf16.mxu0 0
    %794 = vmatpush1.bf16.msra.mxu0 %v393
    %795 = vmatprep.subr.bf16.mxu0 0
    %796 = vmatpush2.bf16.msra.mxu0 %v438
    %797 = vmatprep.subr.bf16.mxu0 0
    %798 = vmatpush2.bf16.msra.mxu0 %v435
    %799 = vmatprep.subr.bf16.mxu0 0
    %800 = vmatpush2.bf16.msra.mxu0 %v432
    %801 = vmatprep.subr.bf16.mxu0 0
    %802 = vmatpush2.bf16.msra.mxu0 %v429
    %803 = vmatprep.subr.bf16.mxu0 0
    %804 = vmatpush2.bf16.msra.mxu0 %v426
    %805 = vmatprep.subr.bf16.mxu0 0
    %806 = vmatpush2.bf16.msra.mxu0 %v423
    %807 = vmatprep.subr.bf16.mxu0 0
    %808 = vmatpush2.bf16.msra.mxu0 %v420
    %809 = vmatprep.subr.bf16.mxu0 0
    %810 = vmatpush2.bf16.msra.mxu0 %v417
    %811 = vmatprep.mubr.bf16.mxu0 %v44
    %812 = vmatmul.mubr.bf16.gmra.mxu0 %v43
    %v813 = vpop.f32.mrf.mxu0
    %v814 = vadd.f32 %v692, %v813
    %v815 = vpop.f32.mrf.mxu0
    %v816 = vpop.f32.mrf.mxu0
    %v817 = vpop.f32.mrf.mxu0
    %818 = vdwg.mxu0
    %819 = vmatprep.subr.bf16.mxu0 0
    %820 = vmatpush1.bf16.msra.mxu0 %v462
    %821 = vmatprep.subr.bf16.mxu0 0
    %822 = vmatpush1.bf16.msra.mxu0 %v459
    %823 = vmatprep.subr.bf16.mxu0 0
    %824 = vmatpush1.bf16.msra.mxu0 %v456
    %825 = vmatprep.subr.bf16.mxu0 0
    %826 = vmatpush1.bf16.msra.mxu0 %v453
    %827 = vmatprep.subr.bf16.mxu0 0
    %828 = vmatpush1.bf16.msra.mxu0 %v450
    %829 = vmatprep.subr.bf16.mxu0 0
    %830 = vmatpush1.bf16.msra.mxu0 %v447
    %831 = vmatprep.subr.bf16.mxu0 0
    %832 = vmatpush1.bf16.msra.mxu0 %v444
    %833 = vmatprep.subr.bf16.mxu0 0
    %834 = vmatpush1.bf16.msra.mxu0 %v441
    %835 = vmatprep.subr.bf16.mxu0 0
    %836 = vmatpush2.bf16.msra.mxu0 0
    %837 = vmatprep.subr.bf16.mxu0 0
    %838 = vmatpush2.bf16.msra.mxu0 0
    %839 = vmatprep.subr.bf16.mxu0 0
    %840 = vmatpush2.bf16.msra.mxu0 0
    %841 = vmatprep.subr.bf16.mxu0 0
    %842 = vmatpush2.bf16.msra.mxu0 0
    %843 = vmatprep.subr.bf16.mxu0 0
    %844 = vmatpush2.bf16.msra.mxu0 0
    %845 = vmatprep.subr.bf16.mxu0 0
    %846 = vmatpush2.bf16.msra.mxu0 0
    %847 = vmatprep.subr.bf16.mxu0 0
    %848 = vmatpush2.bf16.msra.mxu0 0
    %849 = vmatprep.subr.bf16.mxu0 0
    %850 = vmatpush2.bf16.msra.mxu0 0
    %851 = vmatprep.mubr.bf16.mxu0 0
    %852 = vmatmul.mubr.bf16.gmra.mxu0 %v45
    %v853 = vpop.f32.mrf.mxu0
    %v854 = vadd.f32 %v814, %v853
    %v855 = vpop.f32.mrf.mxu0
    %v856 = vpop.f32.mrf.mxu0
    %v857 = vpop.f32.mrf.mxu0
    %858 = vdwg.mxu0
    %v859 = vmul.f32 %v773, %v773
    %v860 = vmul.f32 %v775, %v775
    %v861 = vadd.f32 %v859, %v860
    %v862 = vmul.f32 %v854, %v854
    %v863 = vadd.f32 %v861, %v862
    %v864 = vrsqrt.pop %v863
    %v865 = vmul.f32 %v863, %v864
    %vm866 = vcmp.eq.f32.partialorder %v863, inf
    %v867 = vsel %vm866, %v863, %v865
    %vm868 = vcmp.eq.f32.partialorder %v863, 0.0
    %v869 = vand.u32 %v863, 2147483648
    %v870 = vsel %vm868, %v869, %v867
    %s871 = sld [smem:[#allocation2]]
    %v872 = vstv %s871
    %v873 = vsub.f32 %v870, %v872
    %874 = vst [vmem:[#allocation3] sm:$0xff] %v873
    // Predicated region
    $region18: #{sdf_surface_forward.1} parent=1 // pred_check
      _
    $region19: #{sdf_surface_forward.1} parent=1 // pred_check_branch
      %876 = sbr.rel (0) target = $region21
    $region20: #{sdf_surface_forward.1} parent=1 // pred_region
      %s878 = ssub.s32 128, 128
      %879 = vsyncadd [#allocation4], %s878
      %s881 = sshll.u32 [#allocation3], 4
      %s882 = int_to_ptr.vmem [resolvable:$true] %s881
      %884 = dma.vmem_to_hbm [thread:$0]  %s882, 128, %s4, [#allocation4]
    $region21: #{sdf_surface_forward.1} parent=1 // pred_fallthru
      _
    // Predicated region
    $region22: #{sdf_surface_forward.1} parent=1 // pred_check
      _
    $region23: #{sdf_surface_forward.1} parent=1 // pred_check_branch
      %886 = sbr.rel (0) target = $region25
    $region24: #{sdf_surface_forward.1} parent=1 // pred_region
      %887 = dma.done [#allocation4], 128
    $region25: #{sdf_surface_forward.1} parent=1 // pred_fallthru
      _
    %888 = vsyncpa [#allocation4], 1

</llo_original>
